<compile_context>
chip_gen: v7x
topology: tpu7x:2x2x1
jax: 0.10.0
libtpu: 0.0.40
codegen_flags: <defaults>
</compile_context>

<pallas_src>
import functools

import jax
import jax.numpy as jnp
from jax.experimental import pallas as pl
from jax.experimental.pallas import tpu as pltpu


def _mobile_block_kernel(x_ref, wdw_ref, wpw_ref, b1_ref, b2_ref, o_ref, xpad_ref,
                         *, H, W, C):
    # x_ref   : (1, H, W*C)         activation block (single HBM read; also the residual)
    # wdw_ref : (25, W*C)           depthwise 5x5 weights, BN1 scale folded, tiled over W
    # wpw_ref : (W*C, W*C)          block-diagonal pointwise weights, BN2 scale folded
    # b1_ref  : (1, W*C)            folded BN1 bias (tiled over W)
    # b2_ref  : (1, W*C)            folded BN2 bias (tiled over W)
    # o_ref   : (1, H, W*C)
    # xpad_ref: VMEM scratch (H+4, (W+4)*C) -- zero halo built in-kernel
    WC = W * C
    x = x_ref[0]                                          # (H, WC)

    # ---- in-kernel zero padding (pad = 2 rows, 2 pixels = 2*C lanes) ----------------
    xpad_ref[...] = jnp.zeros_like(xpad_ref)
    xpad_ref[2:2 + H, 2 * C:2 * C + WC] = x
    xp = xpad_ref[...].astype(jnp.float32)                # (H+4, (W+4)*C)

    # ---- depthwise 5x5 conv (stride 1, pad 2); BN1 scale pre-folded into weights ----
    # Width shift j is a lane shift of j*C on the flattened layout (5 lane-offset slices
    # total), height shift i is a sublane-offset slice (25 total). Static unroll.
    acc = jnp.zeros((H, WC), jnp.float32)
    for j in range(5):
        col = xp[:, j * C:j * C + WC]                     # (H+4, WC)
        for i in range(5):
            acc = acc + col[i:i + H, :] * wdw_ref[i * 5 + j, :]

    # ---- BN1 bias + SiLU -------------------------------------------------------------
    y = acc + b1_ref[0]
    y = y * jax.nn.sigmoid(y)

    # ---- pointwise 1x1 conv: one lane-dense block-diagonal MXU matmul (K = N = W*C) --
    y2 = jnp.dot(y, wpw_ref[...], preferred_element_type=jnp.float32)

    # ---- BN2 bias + SiLU -------------------------------------------------------------
    y2 = y2 + b2_ref[0]
    y2 = y2 * jax.nn.sigmoid(y2)

    # ---- residual add (reuses the single activation read) ----------------------------
    o_ref[0] = (x.astype(jnp.float32) + y2).astype(o_ref.dtype)


def _fold_bn(gamma, beta, mean, var, eps):
    scale = gamma / jnp.sqrt(var + eps)
    bias = beta - mean * scale
    return scale, bias


def mobile_block_pallas_nhwc(x_nhwc, w_dw, w_pw, bn1, bn2, eps=1e-5):
    """x_nhwc: (N, H, W, C). Returns (N, H, W, C). No layout passes in HBM."""
    N, H, W, C = x_nhwc.shape
    WC = W * C

    s1, b1 = _fold_bn(*bn1, eps)
    s2, b2 = _fold_bn(*bn2, eps)

    # depthwise weight (C, 1, 5, 5): fold BN1 scale, lay out as (25, W*C) tiled over W so
    # the in-kernel multiply is a lane-aligned broadcast.
    wdw = w_dw[:, 0, :, :] * s1[:, None, None]                               # (C, 5, 5)
    wdw_t = jnp.tile(jnp.transpose(wdw, (1, 2, 0)).reshape(25, C), (1, W))   # (25, WC)

    # pointwise weight (C_out, C_in, 1, 1): fold BN2 scale into output channels, then
    # expand to a block-diagonal (W*C, W*C) matrix so the 1x1 conv is one MXU matmul.
    wpw = jnp.transpose(w_pw[:, :, 0, 0], (1, 0)) * s2[None, :]              # (C_in, C_out)
    wpw_big = jnp.kron(jnp.eye(W, dtype=wpw.dtype), wpw)                     # (WC, WC)

    b1_t = jnp.tile(b1, W).reshape(1, WC)
    b2_t = jnp.tile(b2, W).reshape(1, WC)

    # free reshape (row-major contiguous): (N, H, W, C) -> (N, H, W*C)
    x_flat = x_nhwc.reshape(N, H, WC)

    kernel = functools.partial(_mobile_block_kernel, H=H, W=W, C=C)
    out_flat = pl.pallas_call(
        kernel,
        out_shape=jax.ShapeDtypeStruct((N, H, WC), x_nhwc.dtype),
        grid_spec=pltpu.PrefetchScalarGridSpec(
            num_scalar_prefetch=0,
            grid=(N,),
            in_specs=[
                pl.BlockSpec((1, H, WC), lambda n: (n, 0, 0)),
                pl.BlockSpec((25, WC), lambda n: (0, 0)),
                pl.BlockSpec((WC, WC), lambda n: (0, 0)),
                pl.BlockSpec((1, WC), lambda n: (0, 0)),
                pl.BlockSpec((1, WC), lambda n: (0, 0)),
            ],
            out_specs=pl.BlockSpec((1, H, WC), lambda n: (n, 0, 0)),
            scratch_shapes=[pltpu.VMEM((H + 4, (W + 4) * C), jnp.float32)],
        ),
        compiler_params=pltpu.CompilerParams(
            dimension_semantics=("parallel",),
            vmem_limit_bytes=32 * 1024 * 1024,
        ),
    )(x_flat, wdw_t, wpw_big, b1_t, b2_t)

    return out_flat.reshape(N, H, W, C)


def mobile_block_pallas(x_nchw, w_dw, w_pw, bn1, bn2, eps=1e-5):
    """PyTorch-compatible NCHW entry point.

    The two transposes below are the only remaining HBM layout ops; callers that already
    keep activations in NHWC should call mobile_block_pallas_nhwc directly and skip them.
    """
    x_nhwc = jnp.transpose(x_nchw, (0, 2, 3, 1))
    out_nhwc = mobile_block_pallas_nhwc(x_nhwc, w_dw, w_pw, bn1, bn2, eps)
    return jnp.transpose(out_nhwc, (0, 3, 1, 2))


def mobile_block_reference(x_nchw, w_dw, w_pw, bn1, bn2, eps=1e-5):
    """Pure-JAX reference using lax.conv (matches PyTorch conv/BN-eval semantics)."""
    C = x_nchw.shape[1]

    def bn(y, gamma, beta, mean, var):
        g = (gamma / jnp.sqrt(var + eps)).reshape(1, C, 1, 1)
        b = (beta - mean * gamma / jnp.sqrt(var + eps)).reshape(1, C, 1, 1)
        return y * g + b

    y = jax.lax.conv_general_dilated(
        x_nchw, w_dw, window_strides=(1, 1), padding=((2, 2), (2, 2)),
        dimension_numbers=('NCHW', 'OIHW', 'NCHW'), feature_group_count=C)
    y = bn(y, *bn1)
    y = y * jax.nn.sigmoid(y)
    y = jax.lax.conv_general_dilated(
        y, w_pw, window_strides=(1, 1), padding=((0, 0), (0, 0)),
        dimension_numbers=('NCHW', 'OIHW', 'NCHW'))
    y = bn(y, *bn2)
    y = y * jax.nn.sigmoid(y)
    return x_nchw + y


if __name__ == "__main__":
    key = jax.random.PRNGKey(0)
    N, C, H, W = 2, 8, 16, 16          # W*C = 128 -> fully lane-dense blocks

    ks = jax.random.split(key, 12)
    x = jax.random.normal(ks[0], (N, C, H, W), jnp.float32)

    # Parameters (shapes per nn.Conv2d / nn.BatchNorm2d in MobileBlock.__init__)
    w_dw = jax.random.normal(ks[1], (C, 1, 5, 5), jnp.float32) * 0.2   # depthwise conv
    w_pw = jax.random.normal(ks[2], (C, C, 1, 1), jnp.float32) * 0.2   # pointwise conv
    bn1 = (jax.random.normal(ks[3], (C,), jnp.float32) * 0.1 + 1.0,                   # gamma
           jax.random.normal(ks[4], (C,), jnp.float32) * 0.1,                         # beta
           jax.random.normal(ks[5], (C,), jnp.float32) * 0.1,                         # running_mean
           jnp.abs(jax.random.normal(ks[6], (C,), jnp.float32)) * 0.1 + 1.0)          # running_var
    bn2 = (jax.random.normal(ks[7], (C,), jnp.float32) * 0.1 + 1.0,
           jax.random.normal(ks[8], (C,), jnp.float32) * 0.1,
           jax.random.normal(ks[9], (C,), jnp.float32) * 0.1,
           jnp.abs(jax.random.normal(ks[10], (C,), jnp.float32)) * 0.1 + 1.0)

    out = jax.block_until_ready(mobile_block_pallas(x, w_dw, w_pw, bn1, bn2))
    ref = jax.block_until_ready(mobile_block_reference(x, w_dw, w_pw, bn1, bn2))

    assert out.shape == (N, C, H, W)
    assert jnp.allclose(out, ref, atol=1e-3, rtol=1e-3), float(jnp.max(jnp.abs(out - ref)))
    print("KERNEL_OK")
</pallas_src>

<mosaic_0001>
module attributes {stable_mosaic.version = 11 : i64} {
  func.func @_mobile_block_kernel(%arg0: i32, %arg1: memref<1x16x128xf32, #tpu.memory_space<vmem>>, %arg2: memref<25x128xf32, #tpu.memory_space<vmem>>, %arg3: memref<128x128xf32, #tpu.memory_space<vmem>>, %arg4: memref<1x128xf32, #tpu.memory_space<vmem>>, %arg5: memref<1x128xf32, #tpu.memory_space<vmem>>, %arg6: memref<1x16x128xf32, #tpu.memory_space<vmem>>, %arg7: memref<20x160xf32, #tpu.memory_space<vmem>>) attributes {dimension_semantics = [#tpu.dimension_semantics<parallel>], iteration_bounds = array<i64: 2>, scalar_prefetch = 0 : i64, scratch_operands = 1 : i64, tpu.core_type = #tpu.core_type<tc>, window_params = [{transform_indices = @transform_0, window_bounds = array<i64: 1, 16, 128>}, {pipeline_mode = #tpu.pipeline_mode<synchronous>, transform_indices = @transform_1, window_bounds = array<i64: 25, 128>}, {pipeline_mode = #tpu.pipeline_mode<synchronous>, transform_indices = @transform_2, window_bounds = array<i64: 128, 128>}, {pipeline_mode = #tpu.pipeline_mode<synchronous>, transform_indices = @transform_3, window_bounds = array<i64: 1, 128>}, {pipeline_mode = #tpu.pipeline_mode<synchronous>, transform_indices = @transform_4, window_bounds = array<i64: 1, 128>}, {transform_indices = @transform_5, window_bounds = array<i64: 1, 16, 128>}]} {
    %c0 = arith.constant 0 : index
    %c0_0 = arith.constant 0 : index
    %c0_1 = arith.constant 0 : index
    %0 = vector.load %arg1[%c0, %c0_0, %c0_1] : memref<1x16x128xf32, #tpu.memory_space<vmem>>, vector<1x16x128xf32>
    %1 = vector.shape_cast %0 : vector<1x16x128xf32> to vector<16x128xf32>
    %cst = arith.constant 0.000000e+00 : f32
    %2 = vector.broadcast %cst : f32 to vector<20x160xf32>
    %c0_2 = arith.constant 0 : index
    %c0_3 = arith.constant 0 : index
    %3 = vector.load %arg7[%c0_2, %c0_3] : memref<20x160xf32, #tpu.memory_space<vmem>>, vector<20x160xf32>
    tpu.vector_store %arg7[%c0_2, %c0_3], %2 {strides = array<i32>} : memref<20x160xf32, #tpu.memory_space<vmem>>, vector<20x160xf32>,
    %c2 = arith.constant 2 : index
    %c16 = arith.constant 16 : index
    %4 = vector.load %arg7[%c2, %c16] : memref<20x160xf32, #tpu.memory_space<vmem>>, vector<16x128xf32>
    tpu.vector_store %arg7[%c2, %c16], %1 {strides = array<i32>} : memref<20x160xf32, #tpu.memory_space<vmem>>, vector<16x128xf32>,
    %c0_4 = arith.constant 0 : index
    %c0_5 = arith.constant 0 : index
    %5 = vector.load %arg7[%c0_4, %c0_5] : memref<20x160xf32, #tpu.memory_space<vmem>>, vector<20x160xf32>
    %cst_6 = arith.constant 0.000000e+00 : f32
    %6 = vector.broadcast %cst_6 : f32 to vector<16x128xf32>
    %7 = vector.extract_strided_slice %5 {offsets = [0, 0], sizes = [20, 128], strides = [1, 1]} : vector<20x160xf32> to vector<20x128xf32>
    %8 = vector.extract_strided_slice %7 {offsets = [0, 0], sizes = [16, 128], strides = [1, 1]} : vector<20x128xf32> to vector<16x128xf32>
    %c0_7 = arith.constant 0 : index
    %c0_8 = arith.constant 0 : index
    %9 = vector.load %arg2[%c0_7, %c0_8] : memref<25x128xf32, #tpu.memory_space<vmem>>, vector<1x128xf32>
    %10 = vector.shape_cast %9 : vector<1x128xf32> to vector<128xf32>
    %11 = vector.shape_cast %10 : vector<128xf32> to vector<1x128xf32>
    %12 = vector.broadcast %11 : vector<1x128xf32> to vector<16x128xf32>
    %13 = arith.mulf %8, %12 : vector<16x128xf32>
    %14 = arith.addf %6, %13 : vector<16x128xf32>
    %15 = vector.extract_strided_slice %7 {offsets = [1, 0], sizes = [16, 128], strides = [1, 1]} : vector<20x128xf32> to vector<16x128xf32>
    %c5 = arith.constant 5 : index
    %c0_9 = arith.constant 0 : index
    %16 = vector.load %arg2[%c5, %c0_9] : memref<25x128xf32, #tpu.memory_space<vmem>>, vector<1x128xf32>
    %17 = vector.shape_cast %16 : vector<1x128xf32> to vector<128xf32>
    %18 = vector.shape_cast %17 : vector<128xf32> to vector<1x128xf32>
    %19 = vector.broadcast %18 : vector<1x128xf32> to vector<16x128xf32>
    %20 = arith.mulf %15, %19 : vector<16x128xf32>
    %21 = arith.addf %14, %20 : vector<16x128xf32>
    %22 = vector.extract_strided_slice %7 {offsets = [2, 0], sizes = [16, 128], strides = [1, 1]} : vector<20x128xf32> to vector<16x128xf32>
    %c10 = arith.constant 10 : index
    %c0_10 = arith.constant 0 : index
    %23 = vector.load %arg2[%c10, %c0_10] : memref<25x128xf32, #tpu.memory_space<vmem>>, vector<1x128xf32>
    %24 = vector.shape_cast %23 : vector<1x128xf32> to vector<128xf32>
    %25 = vector.shape_cast %24 : vector<128xf32> to vector<1x128xf32>
    %26 = vector.broadcast %25 : vector<1x128xf32> to vector<16x128xf32>
    %27 = arith.mulf %22, %26 : vector<16x128xf32>
    %28 = arith.addf %21, %27 : vector<16x128xf32>
    %29 = vector.extract_strided_slice %7 {offsets = [3, 0], sizes = [16, 128], strides = [1, 1]} : vector<20x128xf32> to vector<16x128xf32>
    %c15 = arith.constant 15 : index
    %c0_11 = arith.constant 0 : index
    %30 = vector.load %arg2[%c15, %c0_11] : memref<25x128xf32, #tpu.memory_space<vmem>>, vector<1x128xf32>
    %31 = vector.shape_cast %30 : vector<1x128xf32> to vector<128xf32>
    %32 = vector.shape_cast %31 : vector<128xf32> to vector<1x128xf32>
    %33 = vector.broadcast %32 : vector<1x128xf32> to vector<16x128xf32>
    %34 = arith.mulf %29, %33 : vector<16x128xf32>
    %35 = arith.addf %28, %34 : vector<16x128xf32>
    %36 = vector.extract_strided_slice %7 {offsets = [4, 0], sizes = [16, 128], strides = [1, 1]} : vector<20x128xf32> to vector<16x128xf32>
    %c20 = arith.constant 20 : index
    %c0_12 = arith.constant 0 : index
    %37 = vector.load %arg2[%c20, %c0_12] : memref<25x128xf32, #tpu.memory_space<vmem>>, vector<1x128xf32>
    %38 = vector.shape_cast %37 : vector<1x128xf32> to vector<128xf32>
    %39 = vector.shape_cast %38 : vector<128xf32> to vector<1x128xf32>
    %40 = vector.broadcast %39 : vector<1x128xf32> to vector<16x128xf32>
    %41 = arith.mulf %36, %40 : vector<16x128xf32>
    %42 = arith.addf %35, %41 : vector<16x128xf32>
    %43 = vector.extract_strided_slice %5 {offsets = [0, 8], sizes = [20, 128], strides = [1, 1]} : vector<20x160xf32> to vector<20x128xf32>
    %44 = vector.extract_strided_slice %43 {offsets = [0, 0], sizes = [16, 128], strides = [1, 1]} : vector<20x128xf32> to vector<16x128xf32>
    %c1 = arith.constant 1 : index
    %c0_13 = arith.constant 0 : index
    %45 = vector.load %arg2[%c1, %c0_13] : memref<25x128xf32, #tpu.memory_space<vmem>>, vector<1x128xf32>
    %46 = vector.shape_cast %45 : vector<1x128xf32> to vector<128xf32>
    %47 = vector.shape_cast %46 : vector<128xf32> to vector<1x128xf32>
    %48 = vector.broadcast %47 : vector<1x128xf32> to vector<16x128xf32>
    %49 = arith.mulf %44, %48 : vector<16x128xf32>
    %50 = arith.addf %42, %49 : vector<16x128xf32>
    %51 = vector.extract_strided_slice %43 {offsets = [1, 0], sizes = [16, 128], strides = [1, 1]} : vector<20x128xf32> to vector<16x128xf32>
    %c6 = arith.constant 6 : index
    %c0_14 = arith.constant 0 : index
    %52 = vector.load %arg2[%c6, %c0_14] : memref<25x128xf32, #tpu.memory_space<vmem>>, vector<1x128xf32>
    %53 = vector.shape_cast %52 : vector<1x128xf32> to vector<128xf32>
    %54 = vector.shape_cast %53 : vector<128xf32> to vector<1x128xf32>
    %55 = vector.broadcast %54 : vector<1x128xf32> to vector<16x128xf32>
    %56 = arith.mulf %51, %55 : vector<16x128xf32>
    %57 = arith.addf %50, %56 : vector<16x128xf32>
    %58 = vector.extract_strided_slice %43 {offsets = [2, 0], sizes = [16, 128], strides = [1, 1]} : vector<20x128xf32> to vector<16x128xf32>
    %c11 = arith.constant 11 : index
    %c0_15 = arith.constant 0 : index
    %59 = vector.load %arg2[%c11, %c0_15] : memref<25x128xf32, #tpu.memory_space<vmem>>, vector<1x128xf32>
    %60 = vector.shape_cast %59 : vector<1x128xf32> to vector<128xf32>
    %61 = vector.shape_cast %60 : vector<128xf32> to vector<1x128xf32>
    %62 = vector.broadcast %61 : vector<1x128xf32> to vector<16x128xf32>
    %63 = arith.mulf %58, %62 : vector<16x128xf32>
    %64 = arith.addf %57, %63 : vector<16x128xf32>
    %65 = vector.extract_strided_slice %43 {offsets = [3, 0], sizes = [16, 128], strides = [1, 1]} : vector<20x128xf32> to vector<16x128xf32>
    %c16_16 = arith.constant 16 : index
    %c0_17 = arith.constant 0 : index
    %66 = vector.load %arg2[%c16_16, %c0_17] : memref<25x128xf32, #tpu.memory_space<vmem>>, vector<1x128xf32>
    %67 = vector.shape_cast %66 : vector<1x128xf32> to vector<128xf32>
    %68 = vector.shape_cast %67 : vector<128xf32> to vector<1x128xf32>
    %69 = vector.broadcast %68 : vector<1x128xf32> to vector<16x128xf32>
    %70 = arith.mulf %65, %69 : vector<16x128xf32>
    %71 = arith.addf %64, %70 : vector<16x128xf32>
    %72 = vector.extract_strided_slice %43 {offsets = [4, 0], sizes = [16, 128], strides = [1, 1]} : vector<20x128xf32> to vector<16x128xf32>
    %c21 = arith.constant 21 : index
    %c0_18 = arith.constant 0 : index
    %73 = vector.load %arg2[%c21, %c0_18] : memref<25x128xf32, #tpu.memory_space<vmem>>, vector<1x128xf32>
    %74 = vector.shape_cast %73 : vector<1x128xf32> to vector<128xf32>
    %75 = vector.shape_cast %74 : vector<128xf32> to vector<1x128xf32>
    %76 = vector.broadcast %75 : vector<1x128xf32> to vector<16x128xf32>
    %77 = arith.mulf %72, %76 : vector<16x128xf32>
    %78 = arith.addf %71, %77 : vector<16x128xf32>
    %79 = vector.extract_strided_slice %5 {offsets = [0, 16], sizes = [20, 128], strides = [1, 1]} : vector<20x160xf32> to vector<20x128xf32>
    %80 = vector.extract_strided_slice %79 {offsets = [0, 0], sizes = [16, 128], strides = [1, 1]} : vector<20x128xf32> to vector<16x128xf32>
    %c2_19 = arith.constant 2 : index
    %c0_20 = arith.constant 0 : index
    %81 = vector.load %arg2[%c2_19, %c0_20] : memref<25x128xf32, #tpu.memory_space<vmem>>, vector<1x128xf32>
    %82 = vector.shape_cast %81 : vector<1x128xf32> to vector<128xf32>
    %83 = vector.shape_cast %82 : vector<128xf32> to vector<1x128xf32>
    %84 = vector.broadcast %83 : vector<1x128xf32> to vector<16x128xf32>
    %85 = arith.mulf %80, %84 : vector<16x128xf32>
    %86 = arith.addf %78, %85 : vector<16x128xf32>
    %87 = vector.extract_strided_slice %79 {offsets = [1, 0], sizes = [16, 128], strides = [1, 1]} : vector<20x128xf32> to vector<16x128xf32>
    %c7 = arith.constant 7 : index
    %c0_21 = arith.constant 0 : index
    %88 = vector.load %arg2[%c7, %c0_21] : memref<25x128xf32, #tpu.memory_space<vmem>>, vector<1x128xf32>
    %89 = vector.shape_cast %88 : vector<1x128xf32> to vector<128xf32>
    %90 = vector.shape_cast %89 : vector<128xf32> to vector<1x128xf32>
    %91 = vector.broadcast %90 : vector<1x128xf32> to vector<16x128xf32>
    %92 = arith.mulf %87, %91 : vector<16x128xf32>
    %93 = arith.addf %86, %92 : vector<16x128xf32>
    %94 = vector.extract_strided_slice %79 {offsets = [2, 0], sizes = [16, 128], strides = [1, 1]} : vector<20x128xf32> to vector<16x128xf32>
    %c12 = arith.constant 12 : index
    %c0_22 = arith.constant 0 : index
    %95 = vector.load %arg2[%c12, %c0_22] : memref<25x128xf32, #tpu.memory_space<vmem>>, vector<1x128xf32>
    %96 = vector.shape_cast %95 : vector<1x128xf32> to vector<128xf32>
    %97 = vector.shape_cast %96 : vector<128xf32> to vector<1x128xf32>
    %98 = vector.broadcast %97 : vector<1x128xf32> to vector<16x128xf32>
    %99 = arith.mulf %94, %98 : vector<16x128xf32>
    %100 = arith.addf %93, %99 : vector<16x128xf32>
    %101 = vector.extract_strided_slice %79 {offsets = [3, 0], sizes = [16, 128], strides = [1, 1]} : vector<20x128xf32> to vector<16x128xf32>
    %c17 = arith.constant 17 : index
    %c0_23 = arith.constant 0 : index
    %102 = vector.load %arg2[%c17, %c0_23] : memref<25x128xf32, #tpu.memory_space<vmem>>, vector<1x128xf32>
    %103 = vector.shape_cast %102 : vector<1x128xf32> to vector<128xf32>
    %104 = vector.shape_cast %103 : vector<128xf32> to vector<1x128xf32>
    %105 = vector.broadcast %104 : vector<1x128xf32> to vector<16x128xf32>
    %106 = arith.mulf %101, %105 : vector<16x128xf32>
    %107 = arith.addf %100, %106 : vector<16x128xf32>
    %108 = vector.extract_strided_slice %79 {offsets = [4, 0], sizes = [16, 128], strides = [1, 1]} : vector<20x128xf32> to vector<16x128xf32>
    %c22 = arith.constant 22 : index
    %c0_24 = arith.constant 0 : index
    %109 = vector.load %arg2[%c22, %c0_24] : memref<25x128xf32, #tpu.memory_space<vmem>>, vector<1x128xf32>
    %110 = vector.shape_cast %109 : vector<1x128xf32> to vector<128xf32>
    %111 = vector.shape_cast %110 : vector<128xf32> to vector<1x128xf32>
    %112 = vector.broadcast %111 : vector<1x128xf32> to vector<16x128xf32>
    %113 = arith.mulf %108, %112 : vector<16x128xf32>
    %114 = arith.addf %107, %113 : vector<16x128xf32>
    %115 = vector.extract_strided_slice %5 {offsets = [0, 24], sizes = [20, 128], strides = [1, 1]} : vector<20x160xf32> to vector<20x128xf32>
    %116 = vector.extract_strided_slice %115 {offsets = [0, 0], sizes = [16, 128], strides = [1, 1]} : vector<20x128xf32> to vector<16x128xf32>
    %c3 = arith.constant 3 : index
    %c0_25 = arith.constant 0 : index
    %117 = vector.load %arg2[%c3, %c0_25] : memref<25x128xf32, #tpu.memory_space<vmem>>, vector<1x128xf32>
    %118 = vector.shape_cast %117 : vector<1x128xf32> to vector<128xf32>
    %119 = vector.shape_cast %118 : vector<128xf32> to vector<1x128xf32>
    %120 = vector.broadcast %119 : vector<1x128xf32> to vector<16x128xf32>
    %121 = arith.mulf %116, %120 : vector<16x128xf32>
    %122 = arith.addf %114, %121 : vector<16x128xf32>
    %123 = vector.extract_strided_slice %115 {offsets = [1, 0], sizes = [16, 128], strides = [1, 1]} : vector<20x128xf32> to vector<16x128xf32>
    %c8 = arith.constant 8 : index
    %c0_26 = arith.constant 0 : index
    %124 = vector.load %arg2[%c8, %c0_26] : memref<25x128xf32, #tpu.memory_space<vmem>>, vector<1x128xf32>
    %125 = vector.shape_cast %124 : vector<1x128xf32> to vector<128xf32>
    %126 = vector.shape_cast %125 : vector<128xf32> to vector<1x128xf32>
    %127 = vector.broadcast %126 : vector<1x128xf32> to vector<16x128xf32>
    %128 = arith.mulf %123, %127 : vector<16x128xf32>
    %129 = arith.addf %122, %128 : vector<16x128xf32>
    %130 = vector.extract_strided_slice %115 {offsets = [2, 0], sizes = [16, 128], strides = [1, 1]} : vector<20x128xf32> to vector<16x128xf32>
    %c13 = arith.constant 13 : index
    %c0_27 = arith.constant 0 : index
    %131 = vector.load %arg2[%c13, %c0_27] : memref<25x128xf32, #tpu.memory_space<vmem>>, vector<1x128xf32>
    %132 = vector.shape_cast %131 : vector<1x128xf32> to vector<128xf32>
    %133 = vector.shape_cast %132 : vector<128xf32> to vector<1x128xf32>
    %134 = vector.broadcast %133 : vector<1x128xf32> to vector<16x128xf32>
    %135 = arith.mulf %130, %134 : vector<16x128xf32>
    %136 = arith.addf %129, %135 : vector<16x128xf32>
    %137 = vector.extract_strided_slice %115 {offsets = [3, 0], sizes = [16, 128], strides = [1, 1]} : vector<20x128xf32> to vector<16x128xf32>
    %c18 = arith.constant 18 : index
    %c0_28 = arith.constant 0 : index
    %138 = vector.load %arg2[%c18, %c0_28] : memref<25x128xf32, #tpu.memory_space<vmem>>, vector<1x128xf32>
    %139 = vector.shape_cast %138 : vector<1x128xf32> to vector<128xf32>
    %140 = vector.shape_cast %139 : vector<128xf32> to vector<1x128xf32>
    %141 = vector.broadcast %140 : vector<1x128xf32> to vector<16x128xf32>
    %142 = arith.mulf %137, %141 : vector<16x128xf32>
    %143 = arith.addf %136, %142 : vector<16x128xf32>
    %144 = vector.extract_strided_slice %115 {offsets = [4, 0], sizes = [16, 128], strides = [1, 1]} : vector<20x128xf32> to vector<16x128xf32>
    %c23 = arith.constant 23 : index
    %c0_29 = arith.constant 0 : index
    %145 = vector.load %arg2[%c23, %c0_29] : memref<25x128xf32, #tpu.memory_space<vmem>>, vector<1x128xf32>
    %146 = vector.shape_cast %145 : vector<1x128xf32> to vector<128xf32>
    %147 = vector.shape_cast %146 : vector<128xf32> to vector<1x128xf32>
    %148 = vector.broadcast %147 : vector<1x128xf32> to vector<16x128xf32>
    %149 = arith.mulf %144, %148 : vector<16x128xf32>
    %150 = arith.addf %143, %149 : vector<16x128xf32>
    %151 = vector.extract_strided_slice %5 {offsets = [0, 32], sizes = [20, 128], strides = [1, 1]} : vector<20x160xf32> to vector<20x128xf32>
    %152 = vector.extract_strided_slice %151 {offsets = [0, 0], sizes = [16, 128], strides = [1, 1]} : vector<20x128xf32> to vector<16x128xf32>
    %c4 = arith.constant 4 : index
    %c0_30 = arith.constant 0 : index
    %153 = vector.load %arg2[%c4, %c0_30] : memref<25x128xf32, #tpu.memory_space<vmem>>, vector<1x128xf32>
    %154 = vector.shape_cast %153 : vector<1x128xf32> to vector<128xf32>
    %155 = vector.shape_cast %154 : vector<128xf32> to vector<1x128xf32>
    %156 = vector.broadcast %155 : vector<1x128xf32> to vector<16x128xf32>
    %157 = arith.mulf %152, %156 : vector<16x128xf32>
    %158 = arith.addf %150, %157 : vector<16x128xf32>
    %159 = vector.extract_strided_slice %151 {offsets = [1, 0], sizes = [16, 128], strides = [1, 1]} : vector<20x128xf32> to vector<16x128xf32>
    %c9 = arith.constant 9 : index
    %c0_31 = arith.constant 0 : index
    %160 = vector.load %arg2[%c9, %c0_31] : memref<25x128xf32, #tpu.memory_space<vmem>>, vector<1x128xf32>
    %161 = vector.shape_cast %160 : vector<1x128xf32> to vector<128xf32>
    %162 = vector.shape_cast %161 : vector<128xf32> to vector<1x128xf32>
    %163 = vector.broadcast %162 : vector<1x128xf32> to vector<16x128xf32>
    %164 = arith.mulf %159, %163 : vector<16x128xf32>
    %165 = arith.addf %158, %164 : vector<16x128xf32>
    %166 = vector.extract_strided_slice %151 {offsets = [2, 0], sizes = [16, 128], strides = [1, 1]} : vector<20x128xf32> to vector<16x128xf32>
    %c14 = arith.constant 14 : index
    %c0_32 = arith.constant 0 : index
    %167 = vector.load %arg2[%c14, %c0_32] : memref<25x128xf32, #tpu.memory_space<vmem>>, vector<1x128xf32>
    %168 = vector.shape_cast %167 : vector<1x128xf32> to vector<128xf32>
    %169 = vector.shape_cast %168 : vector<128xf32> to vector<1x128xf32>
    %170 = vector.broadcast %169 : vector<1x128xf32> to vector<16x128xf32>
    %171 = arith.mulf %166, %170 : vector<16x128xf32>
    %172 = arith.addf %165, %171 : vector<16x128xf32>
    %173 = vector.extract_strided_slice %151 {offsets = [3, 0], sizes = [16, 128], strides = [1, 1]} : vector<20x128xf32> to vector<16x128xf32>
    %c19 = arith.constant 19 : index
    %c0_33 = arith.constant 0 : index
    %174 = vector.load %arg2[%c19, %c0_33] : memref<25x128xf32, #tpu.memory_space<vmem>>, vector<1x128xf32>
    %175 = vector.shape_cast %174 : vector<1x128xf32> to vector<128xf32>
    %176 = vector.shape_cast %175 : vector<128xf32> to vector<1x128xf32>
    %177 = vector.broadcast %176 : vector<1x128xf32> to vector<16x128xf32>
    %178 = arith.mulf %173, %177 : vector<16x128xf32>
    %179 = arith.addf %172, %178 : vector<16x128xf32>
    %180 = vector.extract_strided_slice %151 {offsets = [4, 0], sizes = [16, 128], strides = [1, 1]} : vector<20x128xf32> to vector<16x128xf32>
    %c24 = arith.constant 24 : index
    %c0_34 = arith.constant 0 : index
    %181 = vector.load %arg2[%c24, %c0_34] : memref<25x128xf32, #tpu.memory_space<vmem>>, vector<1x128xf32>
    %182 = vector.shape_cast %181 : vector<1x128xf32> to vector<128xf32>
    %183 = vector.shape_cast %182 : vector<128xf32> to vector<1x128xf32>
    %184 = vector.broadcast %183 : vector<1x128xf32> to vector<16x128xf32>
    %185 = arith.mulf %180, %184 : vector<16x128xf32>
    %186 = arith.addf %179, %185 : vector<16x128xf32>
    %c0_35 = arith.constant 0 : index
    %c0_36 = arith.constant 0 : index
    %187 = vector.load %arg4[%c0_35, %c0_36] : memref<1x128xf32, #tpu.memory_space<vmem>>, vector<1x128xf32>
    %188 = vector.shape_cast %187 : vector<1x128xf32> to vector<128xf32>
    %189 = vector.shape_cast %188 : vector<128xf32> to vector<1x128xf32>
    %190 = vector.broadcast %189 : vector<1x128xf32> to vector<16x128xf32>
    %191 = arith.addf %186, %190 : vector<16x128xf32>
    %192 = arith.negf %191 : vector<16x128xf32>
    %193 = math.exp %192 : vector<16x128xf32>
    %cst_37 = arith.constant 1.000000e+00 : f32
    %194 = vector.broadcast %cst_37 : f32 to vector<16x128xf32>
    %195 = arith.addf %194, %193 : vector<16x128xf32>
    %196 = arith.divf %194, %195 : vector<16x128xf32>
    %197 = arith.mulf %191, %196 : vector<16x128xf32>
    %c0_38 = arith.constant 0 : index
    %c0_39 = arith.constant 0 : index
    %198 = vector.load %arg3[%c0_38, %c0_39] : memref<128x128xf32, #tpu.memory_space<vmem>>, vector<128x128xf32>
    %cst_40 = arith.constant dense<0.000000e+00> : vector<16x128xf32>
    %199 = tpu.matmul %197, %198, %cst_40 {dimension_numbers = #tpu.dot_dimension_numbers<[1], [0], [0], [1], [0, 0, 1, 1], [], []>} : vector<16x128xf32>, vector<128x128xf32>, vector<16x128xf32> -> vector<16x128xf32>
    %c0_41 = arith.constant 0 : index
    %c0_42 = arith.constant 0 : index
    %200 = vector.load %arg5[%c0_41, %c0_42] : memref<1x128xf32, #tpu.memory_space<vmem>>, vector<1x128xf32>
    %201 = vector.shape_cast %200 : vector<1x128xf32> to vector<128xf32>
    %202 = vector.shape_cast %201 : vector<128xf32> to vector<1x128xf32>
    %203 = vector.broadcast %202 : vector<1x128xf32> to vector<16x128xf32>
    %204 = arith.addf %199, %203 : vector<16x128xf32>
    %205 = arith.negf %204 : vector<16x128xf32>
    %206 = math.exp %205 : vector<16x128xf32>
    %cst_43 = arith.constant 1.000000e+00 : f32
    %207 = vector.broadcast %cst_43 : f32 to vector<16x128xf32>
    %208 = arith.addf %207, %206 : vector<16x128xf32>
    %209 = arith.divf %207, %208 : vector<16x128xf32>
    %210 = arith.mulf %204, %209 : vector<16x128xf32>
    %211 = arith.addf %1, %210 : vector<16x128xf32>
    %c0_44 = arith.constant 0 : index
    %c0_45 = arith.constant 0 : index
    %c0_46 = arith.constant 0 : index
    %212 = vector.load %arg6[%c0_44, %c0_45, %c0_46] : memref<1x16x128xf32, #tpu.memory_space<vmem>>, vector<1x16x128xf32>
    %213 = vector.shape_cast %212 : vector<1x16x128xf32> to vector<16x128xf32>
    %214 = vector.shape_cast %211 : vector<16x128xf32> to vector<1x16x128xf32>
    tpu.vector_store %arg6[%c0_44, %c0_45, %c0_46], %214 {strides = array<i32>} : memref<1x16x128xf32, #tpu.memory_space<vmem>>, vector<1x16x128xf32>,
    return
  }
  func.func @transform_0(%arg0: i32) -> (i32, i32, i32) {
    %c0_i32 = arith.constant 0 : i32
    %c0_i32_0 = arith.constant 0 : i32
    %c0_i32_1 = arith.constant 0 : i32
    return %arg0, %c0_i32, %c0_i32_0 : i32, i32, i32
  }
  func.func @transform_1(%arg0: i32) -> (i32, i32) {
    %c0_i32 = arith.constant 0 : i32
    %c0_i32_0 = arith.constant 0 : i32
    %c0_i32_1 = arith.constant 0 : i32
    return %c0_i32, %c0_i32_0 : i32, i32
  }
  func.func @transform_2(%arg0: i32) -> (i32, i32) {
    %c0_i32 = arith.constant 0 : i32
    %c0_i32_0 = arith.constant 0 : i32
    %c0_i32_1 = arith.constant 0 : i32
    return %c0_i32, %c0_i32_0 : i32, i32
  }
  func.func @transform_3(%arg0: i32) -> (i32, i32) {
    %c0_i32 = arith.constant 0 : i32
    %c0_i32_0 = arith.constant 0 : i32
    %c0_i32_1 = arith.constant 0 : i32
    return %c0_i32, %c0_i32_0 : i32, i32
  }
  func.func @transform_4(%arg0: i32) -> (i32, i32) {
    %c0_i32 = arith.constant 0 : i32
    %c0_i32_0 = arith.constant 0 : i32
    %c0_i32_1 = arith.constant 0 : i32
    return %c0_i32, %c0_i32_0 : i32, i32
  }
  func.func @transform_5(%arg0: i32) -> (i32, i32, i32) {
    %c0_i32 = arith.constant 0 : i32
    %c0_i32_0 = arith.constant 0 : i32
    %c0_i32_1 = arith.constant 0 : i32
    return %arg0, %c0_i32, %c0_i32_0 : i32, i32, i32
  }
}

</mosaic_0001>

<llo_original>
// kernel: tpu_custom_call.1
$region0: #{tpu_custom_call.1}
  #allocation0 [shape = 'u32[]', space=smem, size = 0x4, offset = 0x4, fixed_abs, tag = 'smem constant byte address 0x4 - core index']
  #allocation1 [shape = 'u32[144,128]{1,0:T(1,128)}', space=vmem, size = 0x12000, scoped, tag = 'internal scratch']
  #allocation2 [shape = 'f32[20,160]{1,0:T(8,128)}', space=vmem, size = 0x6000, scoped, tag = 'scratch operand']
  %s0 = inlined_call_operand.hbm [shape: f32[2,16,128], index: 0, kind: input, shape index: {}]
  %s1 = inlined_call_operand.hbm [shape: f32[25,128], index: 1, kind: input, shape index: {}]
  %s2 = inlined_call_operand.hbm [shape: f32[128,128], index: 2, kind: input, shape index: {}]
  %s3 = inlined_call_operand.vmem [shape: f32[1,128], index: 3, kind: input, shape index: {}]
  %s4 = inlined_call_operand.vmem [shape: f32[1,128], index: 4, kind: input, shape index: {}]
  %s5 = inlined_call_operand.hbm [shape: f32[2,16,128], index: 5, kind: output, shape index: {}]
  %s6 = sld [smem:[#allocation0]]
  $region65: #{tpu_custom_call.1} parent=0
    _
  %s8 = ssub.s32 1, %s6
  %s9 = scalar_select 0, %s8, %s6
  $region1: #{tpu_custom_call.1} parent=0
    #allocation3 [shape = 'u8[16384]{0}', space=vmem, size = 0x4000, scoped, tag = 'input window, operand 0']
    #allocation4 [shape = 's32[2]{0}', space=sflag, size = 0x8, scoped, tag = 'scoped memory for tpu_custom_call.1']
    #allocation5 [shape = 's32[2]{0}', space=sflag, size = 0x8, scoped, tag = 'scoped memory for tpu_custom_call.1']
    #allocation6 [shape = 'u8[16384]{0}', space=vmem, size = 0x4000, scoped, tag = 'input window, operand 1, single buffered']
    #allocation7 [shape = 's32[1]{0}', space=sflag, size = 0x4, scoped, tag = 'scoped memory for tpu_custom_call.1']
    #allocation8 [shape = 'u8[65536]{0}', space=vmem, size = 0x10000, scoped, tag = 'input window, operand 2, single buffered']
    #allocation9 [shape = 'u8[16384]{0}', space=vmem, size = 0x4000, scoped, tag = 'output window, operand 0']
    %10 = vsyncpa [#allocation4], 0
    %s11 = scalar_lea.sflag [#allocation4], 1
    %12 = vsyncpa %s11, 0
    %13 = vsyncpa [#allocation7], 0
    %14 = vsyncpa [#allocation5], 0
    %s15 = scalar_lea.sflag [#allocation5], 1
    %16 = vsyncpa %s15, 0
    loop: start=0, step=1, limit=4
    $region2: #{tpu_custom_call.1} parent=1 // loop_pre_header
      _
    $region3: #{tpu_custom_call.1} parent=1 // loop_header
      %s18 = sphi 0, %s22
      %p19 = scmp.ge.s32.totalorder %s18, 4
      %s28 = sphi 0, %s30
      %s31 = sphi 0, %s28
      %s32 = sphi 0, %s31
      %s48 = sphi 0, %s32
      %s52 = sphi 0, %s52
      %s54 = sphi 0, %s52
      %s55 = sphi 0, %s54
      %s69 = sphi 0, %s55
      %s73 = sphi 0, %s73
      %s75 = sphi 0, %s73
      %s76 = sphi 0, %s75
      %s90 = sphi 0, %s76
      %s94 = sphi 0, %s94
      %s96 = sphi 0, %s94
      %s97 = sphi 0, %s96
      %s111 = sphi 0, %s97
      %s115 = sphi 0, %s115
      %s117 = sphi 0, %s115
      %s118 = sphi 0, %s117
      %s132 = sphi 0, %s118
      %s138 = sphi 0, %s140
      %s141 = sphi 0, %s138
      %s142 = sphi 0, %s141
      %s158 = sphi 0, %s142
    $region4: #{tpu_custom_call.1} parent=1 // loop_header_branch
      %21 = sbr.rel (%p19) target = $region8
    $region5: #{tpu_custom_call.1} parent=1 // loop_body
      %s23 = ssub.s32 %s18, 1
      %s24 = ssub.s32 %s18, 2
      %s25 = sadd.s32 %s18, 1
      %s26 = ssub.s32 %s18, %s25
      %p27 = scmp.eq.s32.totalorder %s26, 0
      %s29 = sadd.s32 %s28, 1
      %s30 = scalar_select %p27, %s28, %s29
      %p33 = pneg %p27
      %p34 = scmp.eq.s32.totalorder %s18, 1
      %p35 = por %p33, %p34
      %p36 = scmp.ne.s32.totalorder %s28, %s31
      %p37 = scmp.eq.s32.totalorder %s18, 0
      %p38 = por %p36, %p37
      %p39 = scmp.ne.s32.totalorder %s28, %s31
      %p40 = scmp.eq.s32.totalorder %s23, 1
      %p41 = por %p39, %p40
      %p42 = scmp.ne.s32.totalorder %s31, %s32
      %p43 = scmp.eq.s32.totalorder %s23, 0
      %p44 = por %p42, %p43
      %p45 = scmp.ne.s32.totalorder %s31, %s32
      %p46 = scmp.eq.s32.totalorder %s24, 1
      %p47 = por %p45, %p46
      %p49 = scmp.ne.s32.totalorder %s32, %s48
      %p50 = scmp.eq.s32.totalorder %s24, 0
      %p51 = por %p49, %p50
      %s53 = sadd.s32 %s52, 1
      %p56 = scmp.eq.s32.totalorder %s18, 1
      %p57 = scmp.ne.s32.totalorder %s52, %s54
      %p58 = scmp.eq.s32.totalorder %s18, 0
      %p59 = por %p57, %p58
      %p60 = scmp.ne.s32.totalorder %s52, %s54
      %p61 = scmp.eq.s32.totalorder %s23, 1
      %p62 = por %p60, %p61
      %p63 = scmp.ne.s32.totalorder %s54, %s55
      %p64 = scmp.eq.s32.totalorder %s23, 0
      %p65 = por %p63, %p64
      %p66 = scmp.ne.s32.totalorder %s54, %s55
      %p67 = scmp.eq.s32.totalorder %s24, 1
      %p68 = por %p66, %p67
      %p70 = scmp.ne.s32.totalorder %s55, %s69
      %p71 = scmp.eq.s32.totalorder %s24, 0
      %p72 = por %p70, %p71
      %s74 = sadd.s32 %s73, 1
      %p77 = scmp.eq.s32.totalorder %s18, 1
      %p78 = scmp.ne.s32.totalorder %s73, %s75
      %p79 = scmp.eq.s32.totalorder %s18, 0
      %p80 = por %p78, %p79
      %p81 = scmp.ne.s32.totalorder %s73, %s75
      %p82 = scmp.eq.s32.totalorder %s23, 1
      %p83 = por %p81, %p82
      %p84 = scmp.ne.s32.totalorder %s75, %s76
      %p85 = scmp.eq.s32.totalorder %s23, 0
      %p86 = por %p84, %p85
      %p87 = scmp.ne.s32.totalorder %s75, %s76
      %p88 = scmp.eq.s32.totalorder %s24, 1
      %p89 = por %p87, %p88
      %p91 = scmp.ne.s32.totalorder %s76, %s90
      %p92 = scmp.eq.s32.totalorder %s24, 0
      %p93 = por %p91, %p92
      %s95 = sadd.s32 %s94, 1
      %p98 = scmp.eq.s32.totalorder %s18, 1
      %p99 = scmp.ne.s32.totalorder %s94, %s96
      %p100 = scmp.eq.s32.totalorder %s18, 0
      %p101 = por %p99, %p100
      %p102 = scmp.ne.s32.totalorder %s94, %s96
      %p103 = scmp.eq.s32.totalorder %s23, 1
      %p104 = por %p102, %p103
      %p105 = scmp.ne.s32.totalorder %s96, %s97
      %p106 = scmp.eq.s32.totalorder %s23, 0
      %p107 = por %p105, %p106
      %p108 = scmp.ne.s32.totalorder %s96, %s97
      %p109 = scmp.eq.s32.totalorder %s24, 1
      %p110 = por %p108, %p109
      %p112 = scmp.ne.s32.totalorder %s97, %s111
      %p113 = scmp.eq.s32.totalorder %s24, 0
      %p114 = por %p112, %p113
      %s116 = sadd.s32 %s115, 1
      %p119 = scmp.eq.s32.totalorder %s18, 1
      %p120 = scmp.ne.s32.totalorder %s115, %s117
      %p121 = scmp.eq.s32.totalorder %s18, 0
      %p122 = por %p120, %p121
      %p123 = scmp.ne.s32.totalorder %s115, %s117
      %p124 = scmp.eq.s32.totalorder %s23, 1
      %p125 = por %p123, %p124
      %p126 = scmp.ne.s32.totalorder %s117, %s118
      %p127 = scmp.eq.s32.totalorder %s23, 0
      %p128 = por %p126, %p127
      %p129 = scmp.ne.s32.totalorder %s117, %s118
      %p130 = scmp.eq.s32.totalorder %s24, 1
      %p131 = por %p129, %p130
      %p133 = scmp.ne.s32.totalorder %s118, %s132
      %p134 = scmp.eq.s32.totalorder %s24, 0
      %p135 = por %p133, %p134
      %s136 = ssub.s32 %s18, %s25
      %p137 = scmp.eq.s32.totalorder %s136, 0
      %s139 = sadd.s32 %s138, 1
      %s140 = scalar_select %p137, %s138, %s139
      %p143 = pneg %p137
      %p144 = scmp.eq.s32.totalorder %s18, 1
      %p145 = por %p143, %p144
      %p146 = scmp.ne.s32.totalorder %s138, %s141
      %p147 = scmp.eq.s32.totalorder %s18, 0
      %p148 = por %p146, %p147
      %p149 = scmp.ne.s32.totalorder %s138, %s141
      %p150 = scmp.eq.s32.totalorder %s23, 1
      %p151 = por %p149, %p150
      %p152 = scmp.ne.s32.totalorder %s141, %s142
      %p153 = scmp.eq.s32.totalorder %s23, 0
      %p154 = por %p152, %p153
      %p155 = scmp.ne.s32.totalorder %s141, %s142
      %p156 = scmp.eq.s32.totalorder %s24, 1
      %p157 = por %p155, %p156
      %p159 = scmp.ne.s32.totalorder %s142, %s158
      %p160 = scmp.eq.s32.totalorder %s24, 0
      %p161 = por %p159, %p160
      %p162 = scmp.le.s32.totalorder 1, %s18
      %p163 = scmp.lt.s32.totalorder %s18, 3
      %p164 = pnand %p162, %p163
      %p165 = pneg %p164
      // Predicated region
      $region9: #{tpu_custom_call.1} parent=5 // pred_check
        _
      $region10: #{tpu_custom_call.1} parent=5 // pred_check_branch
        %167 = sbr.rel (%p164) target = $region12
      $region11: #{tpu_custom_call.1} parent=5 // pred_region
        %s168 = ssub.s32 %s18, 1
        // Predicated region
        $region13: #{tpu_custom_call.1} parent=11 // pred_check
          %p169 = pneg %p65
        $region14: #{tpu_custom_call.1} parent=11 // pred_check_branch
          %171 = sbr.rel (%p169) target = $region16
        $region15: #{tpu_custom_call.1} parent=11 // pred_region
          %s173 = ssub.s32 512, 512
          %174 = vsyncadd [#allocation7], %s173
          %s175 = sshll.u32 [#allocation6], 4
          %s176 = int_to_ptr.vmem [resolvable:$true] %s175
          %181 = dma.hbm_to_vmem [thread:$0]  %s1, 512, %s176, [#allocation7], 128, 128, 8
        $region16: #{tpu_custom_call.1} parent=11 // pred_fallthru
          _
        // Predicated region
        $region17: #{tpu_custom_call.1} parent=11 // pred_check
          %p182 = pneg %p86
        $region18: #{tpu_custom_call.1} parent=11 // pred_check_branch
          %184 = sbr.rel (%p182) target = $region20
        $region19: #{tpu_custom_call.1} parent=11 // pred_region
          %s186 = ssub.s32 2048, 2048
          %187 = vsyncadd [#allocation7], %s186
          %s188 = sshll.u32 [#allocation8], 4
          %s189 = int_to_ptr.vmem [resolvable:$true] %s188
          %194 = dma.hbm_to_vmem [thread:$0]  %s2, 2048, %s189, [#allocation7], 128, 128, 8
        $region20: #{tpu_custom_call.1} parent=11 // pred_fallthru
          _
        // Predicated region
        $region21: #{tpu_custom_call.1} parent=11 // pred_check
          %p195 = pneg %p107
        $region22: #{tpu_custom_call.1} parent=11 // pred_check_branch
          %197 = sbr.rel (%p195) target = $region24
        $region23: #{tpu_custom_call.1} parent=11 // pred_region
          _
        $region24: #{tpu_custom_call.1} parent=11 // pred_fallthru
          _
        // Predicated region
        $region25: #{tpu_custom_call.1} parent=11 // pred_check
          %p198 = pneg %p128
        $region26: #{tpu_custom_call.1} parent=11 // pred_check_branch
          %200 = sbr.rel (%p198) target = $region28
        $region27: #{tpu_custom_call.1} parent=11 // pred_region
          _
        $region28: #{tpu_custom_call.1} parent=11 // pred_fallthru
          _
      $region12: #{tpu_custom_call.1} parent=5 // pred_fallthru
        _
      %p201 = scmp.lt.s32.totalorder %s18, 2
      // Predicated region
      $region29: #{tpu_custom_call.1} parent=5 // pred_check
        %p202 = pneg %p201
      $region30: #{tpu_custom_call.1} parent=5 // pred_check_branch
        %204 = sbr.rel (%p202) target = $region32
      $region31: #{tpu_custom_call.1} parent=5 // pred_region
        // Predicated region
        $region33: #{tpu_custom_call.1} parent=31 // pred_check
          %p205 = pneg %p38
        $region34: #{tpu_custom_call.1} parent=31 // pred_check_branch
          %207 = sbr.rel (%p205) target = $region36
        $region35: #{tpu_custom_call.1} parent=31 // pred_region
          %s208 = sand.u32 %s28, 1
          %s209 = scalar_lea.sflag [#allocation4], %s208
          %s210 = sand.u32 %s28, 1
          %s211 = smul.addr %s210, 16
          %s212 = scalar_lea.vmem [#allocation3], %s211
          %s214 = ssub.s32 256, 256
          %215 = vsyncadd %s209, %s214
          %s216 = smul.addr %s18, 2
          %s217 = smul.addr %s216, 128
          %s218 = scalar_lea.hbm %s0, %s217
          %s219 = sshll.u32 %s212, 4
          %s220 = int_to_ptr.vmem [resolvable:$true] %s219
          %225 = dma.hbm_to_vmem [thread:$0]  %s218, 256, %s220, %s209, 128, 128, 8
        $region36: #{tpu_custom_call.1} parent=31 // pred_fallthru
          _
      $region32: #{tpu_custom_call.1} parent=5 // pred_fallthru
        _
      %p226 = scmp.le.s32.totalorder 1, %s18
      %p227 = scmp.lt.s32.totalorder %s18, 3
      %p228 = pnand %p226, %p227
      %p229 = pneg %p228
      // Predicated region
      $region37: #{tpu_custom_call.1} parent=5 // pred_check
        _
      $region38: #{tpu_custom_call.1} parent=5 // pred_check_branch
        %231 = sbr.rel (%p228) target = $region40
      $region39: #{tpu_custom_call.1} parent=5 // pred_region
        %s232 = ssub.s32 %s18, 1
        %s233 = sand.u32 %s31, 1
        %s234 = scalar_lea.sflag [#allocation4], %s233
        %s235 = sand.u32 %s31, 1
        %s236 = smul.addr %s235, 16
        %s237 = scalar_lea.vmem [#allocation3], %s236
        // Predicated region
        $region41: #{tpu_custom_call.1} parent=39 // pred_check
          %p238 = pneg %p44
        $region42: #{tpu_custom_call.1} parent=39 // pred_check_branch
          %240 = sbr.rel (%p238) target = $region44
        $region43: #{tpu_custom_call.1} parent=39 // pred_region
          %241 = dma.done %s234, 256
        $region44: #{tpu_custom_call.1} parent=39 // pred_fallthru
          _
        // Predicated region
        $region45: #{tpu_custom_call.1} parent=39 // pred_check
          %p242 = pneg %p65
        $region46: #{tpu_custom_call.1} parent=39 // pred_check_branch
          %244 = sbr.rel (%p242) target = $region48
        $region47: #{tpu_custom_call.1} parent=39 // pred_region
          %245 = dma.done [#allocation7], 512
        $region48: #{tpu_custom_call.1} parent=39 // pred_fallthru
          _
        // Predicated region
        $region49: #{tpu_custom_call.1} parent=39 // pred_check
          %p246 = pneg %p86
        $region50: #{tpu_custom_call.1} parent=39 // pred_check_branch
          %248 = sbr.rel (%p246) target = $region52
        $region51: #{tpu_custom_call.1} parent=39 // pred_region
          %249 = dma.done [#allocation7], 2048
        $region52: #{tpu_custom_call.1} parent=39 // pred_fallthru
          _
        %s250 = sand.u32 %s31, 1
        %s251 = scalar_lea.sflag [#allocation4], %s250
        %s252 = sand.u32 %s31, 1
        %s253 = smul.addr %s252, 16
        %s254 = scalar_lea.vmem [#allocation3], %s253
        %p255 = pneg %p44
        %p256 = pneg %p41
        %p257 = pneg %p65
        %p258 = pneg %p62
        %p259 = pneg %p86
        %p260 = pneg %p83
        %p261 = pneg %p107
        %p262 = pneg %p104
        %p263 = pneg %p128
        %p264 = pneg %p125
        %p265 = pneg %p154
        %p266 = pneg %p151
        %s267 = sand.u32 %s141, 1
        %s268 = scalar_lea.sflag [#allocation5], %s267
        %s269 = sand.u32 %s141, 1
        %s270 = smul.addr %s269, 16
        %s271 = scalar_lea.vmem [#allocation9], %s270
        %v272 = vld [vmem:[%s237] sm:$0xff]
        %v273 = vld [vmem:[%s237 + $0x8] sm:$0xff]
        %274 = vst [vmem:[#allocation2] sm:$0xff] 0.0
        %vm275 = vcmask 261120
        %276 = vst.msk [vmem:[#allocation2 + $0x8] sm:$0xff] %vm275, 0.0
        %277 = vst [vmem:[#allocation2 + $0x10] sm:$0xff] 0.0
        %278 = vst.msk [vmem:[#allocation2 + $0x18] sm:$0xff] %vm275, 0.0
        %279 = vst [vmem:[#allocation2 + $0x20] sm:$0xf] 0.0
        %vm280 = vcmask 257024
        %281 = vst.msk [vmem:[#allocation2 + $0x28] sm:$0xf] %vm280, 0.0
        %vm284 = vcmask 1041408
        %v285 = vrot.slane %v272, 6
        %v286 = vrot.slane %v273, 6
        %v287 = vsel %vm284, %v285, %v286
        %288 = vrot.lane.b32.xlu0 %v285, 16
        %v289 = vpop.permute.xlu0 %288
        %290 = vrot.lane.b32.xlu0 %v287, 16
        %v291 = vpop.permute.xlu0 %290
        %292 = vrot.lane.b32.xlu0 %v286, 16
        %v293 = vpop.permute.xlu0 %292
        %vm297 = vcmask 1047682
        %298 = vst.msk [vmem:[#allocation2] sm:$0xfc] %vm297, %v289
        %vm299 = vcmask 130050
        %300 = vst.msk [vmem:[#allocation2 + $0x8] sm:$0xfc] %vm299, %v289
        %vm301 = vcmask 1047680
        %302 = vst.msk [vmem:[#allocation2 + $0x10] sm:$0xff] %vm301, %v291
        %vm303 = vcmask 130048
        %304 = vst.msk [vmem:[#allocation2 + $0x18] sm:$0xff] %vm303, %v291
        %vm305 = vcmask 1041536
        %306 = vst.msk [vmem:[#allocation2 + $0x20] sm:$0x3] %vm305, %v293
        %vm307 = vcmask 123904
        %308 = vst.msk [vmem:[#allocation2 + $0x28] sm:$0x3] %vm307, %v293
        %v309 = vld [vmem:[#allocation2] sm:$0xff]
        %v310 = vld [vmem:[#allocation2 + $0x8] sm:$0xff]
        %v311 = vld [vmem:[#allocation2 + $0x10] sm:$0xff]
        %v312 = vld [vmem:[#allocation2 + $0x18] sm:$0xff]
        %v313 = vld [vmem:[#allocation2 + $0x20] sm:$0xf]
        %v314 = vld [vmem:[#allocation2 + $0x28] sm:$0xf]
        %v315 = vld [vmem:[#allocation6] sm:$0x1]
        %v316 = vlaneseq
        %v317 = vshrl.u32 %v316, 7
        %v318 = vsub.s32 0, %v317
        %v319 = vrot.slane %v315, %v318
        %v320 = vmul.f32 %v309, %v319
        %v321 = vmul.f32 %v311, %v319
        %v322 = vadd.f32 %v320, 0.0
        %v323 = vadd.f32 %v321, 0.0
        %v324 = vld [vmem:[#allocation6 + $0x5] sm:$0x1]
        %v325 = vlaneseq
        %v326 = vshrl.u32 %v325, 7
        %v327 = vsub.s32 0, %v326
        %v328 = vrot.slane %v324, %v327
        %v329 = vmul.f32 %v309, %v328
        %v330 = vmul.f32 %v311, %v328
        %v331 = vmul.f32 %v313, %v328
        %vm335 = vcmask 1046528
        %v336 = vrot.slane %v329, 1
        %v337 = vrot.slane %v330, 1
        %v338 = vsel %vm335, %v336, %v337
        %v339 = vrot.slane %v331, 1
        %v340 = vsel %vm335, %v337, %v339
        %v343 = vadd.f32 %v322, %v338
        %v344 = vadd.f32 %v323, %v340
        %v345 = vld [vmem:[#allocation6 + $0xa] sm:$0x1]
        %v346 = vlaneseq
        %v347 = vshrl.u32 %v346, 7
        %v348 = vsub.s32 0, %v347
        %v349 = vrot.slane %v345, %v348
        %v350 = vmul.f32 %v309, %v349
        %v351 = vmul.f32 %v311, %v349
        %v352 = vmul.f32 %v313, %v349
        %vm356 = vcmask 1045504
        %v357 = vrot.slane %v350, 2
        %v358 = vrot.slane %v351, 2
        %v359 = vsel %vm356, %v357, %v358
        %v360 = vrot.slane %v352, 2
        %v361 = vsel %vm356, %v358, %v360
        %v364 = vadd.f32 %v343, %v359
        %v365 = vadd.f32 %v344, %v361
        %v366 = vld [vmem:[#allocation6 + $0xf] sm:$0x1]
        %v367 = vlaneseq
        %v368 = vshrl.u32 %v367, 7
        %v369 = vsub.s32 0, %v368
        %v370 = vrot.slane %v366, %v369
        %v371 = vmul.f32 %v309, %v370
        %v372 = vmul.f32 %v311, %v370
        %v373 = vmul.f32 %v313, %v370
        %vm377 = vcmask 1044480
        %v378 = vrot.slane %v371, 3
        %v379 = vrot.slane %v372, 3
        %v380 = vsel %vm377, %v378, %v379
        %v381 = vrot.slane %v373, 3
        %v382 = vsel %vm377, %v379, %v381
        %v385 = vadd.f32 %v364, %v380
        %v386 = vadd.f32 %v365, %v382
        %v387 = vld [vmem:[#allocation6 + $0x14] sm:$0x1]
        %v388 = vlaneseq
        %v389 = vshrl.u32 %v388, 7
        %v390 = vsub.s32 0, %v389
        %v391 = vrot.slane %v387, %v390
        %v392 = vmul.f32 %v309, %v391
        %v393 = vmul.f32 %v311, %v391
        %v394 = vmul.f32 %v313, %v391
        %vm398 = vcmask 1043456
        %v399 = vrot.slane %v392, 4
        %v400 = vrot.slane %v393, 4
        %v401 = vsel %vm398, %v399, %v400
        %v402 = vrot.slane %v394, 4
        %v403 = vsel %vm398, %v400, %v402
        %v406 = vadd.f32 %v385, %v401
        %v407 = vadd.f32 %v386, %v403
        %v408 = vld [vmem:[#allocation6 + $0x1] sm:$0x1]
        %v409 = vlaneseq
        %v410 = vshrl.u32 %v409, 7
        %v411 = vsub.s32 0, %v410
        %v412 = vrot.slane %v408, %v411
        %414 = vrot.lane.b32.xlu0 %v412, 8
        %v415 = vpop.permute.xlu0 %414
        %v417 = vmul.f32 %v309, %v415
        %v418 = vmul.f32 %v310, %v415
        %v419 = vmul.f32 %v311, %v415
        %v420 = vmul.f32 %v312, %v415
        %425 = vrot.lane.b32.xlu0 %v417, 120
        %v426 = vpop.permute.xlu0 %425
        %427 = vrot.lane.b32.xlu0 %v418, 120
        %v428 = vpop.permute.xlu0 %427
        %429 = vrot.lane.b32.xlu0 %v419, 120
        %v430 = vpop.permute.xlu0 %429
        %431 = vrot.lane.b32.xlu0 %v420, 120
        %v432 = vpop.permute.xlu0 %431
        %vm433 = vcmask 982016
        %v434 = vsel %vm433, %v426, %v428
        %v435 = vsel %vm433, %v430, %v432
        %v438 = vadd.f32 %v406, %v434
        %v439 = vadd.f32 %v407, %v435
        %v440 = vld [vmem:[#allocation6 + $0x6] sm:$0x1]
        %v441 = vlaneseq
        %v442 = vshrl.u32 %v441, 7
        %v443 = vsub.s32 0, %v442
        %v444 = vrot.slane %v440, %v443
        %446 = vrot.lane.b32.xlu0 %v444, 8
        %v447 = vpop.permute.xlu0 %446
        %v449 = vmul.f32 %v309, %v447
        %v450 = vmul.f32 %v310, %v447
        %v451 = vmul.f32 %v311, %v447
        %v452 = vmul.f32 %v312, %v447
        %v453 = vmul.f32 %v313, %v447
        %v454 = vmul.f32 %v314, %v447
        %v461 = vrot.slane %v449, 1
        %v462 = vrot.slane %v451, 1
        %v463 = vsel %vm335, %v461, %v462
        %v464 = vrot.slane %v450, 1
        %v465 = vrot.slane %v452, 1
        %v466 = vsel %vm335, %v464, %v465
        %v467 = vrot.slane %v453, 1
        %v468 = vsel %vm335, %v462, %v467
        %v469 = vrot.slane %v454, 1
        %v470 = vsel %vm335, %v465, %v469
        %471 = vrot.lane.b32.xlu0 %v463, 120
        %v472 = vpop.permute.xlu0 %471
        %473 = vrot.lane.b32.xlu0 %v466, 120
        %v474 = vpop.permute.xlu0 %473
        %475 = vrot.lane.b32.xlu0 %v468, 120
        %v476 = vpop.permute.xlu0 %475
        %477 = vrot.lane.b32.xlu0 %v470, 120
        %v478 = vpop.permute.xlu0 %477
        %v479 = vsel %vm433, %v472, %v474
        %v480 = vsel %vm433, %v476, %v478
        %v483 = vadd.f32 %v438, %v479
        %v484 = vadd.f32 %v439, %v480
        %v485 = vld [vmem:[#allocation6 + $0xb] sm:$0x1]
        %v486 = vlaneseq
        %v487 = vshrl.u32 %v486, 7
        %v488 = vsub.s32 0, %v487
        %v489 = vrot.slane %v485, %v488
        %491 = vrot.lane.b32.xlu0 %v489, 8
        %v492 = vpop.permute.xlu0 %491
        %v494 = vmul.f32 %v309, %v492
        %v495 = vmul.f32 %v310, %v492
        %v496 = vmul.f32 %v311, %v492
        %v497 = vmul.f32 %v312, %v492
        %v498 = vmul.f32 %v313, %v492
        %v499 = vmul.f32 %v314, %v492
        %v506 = vrot.slane %v494, 2
        %v507 = vrot.slane %v496, 2
        %v508 = vsel %vm356, %v506, %v507
        %v509 = vrot.slane %v495, 2
        %v510 = vrot.slane %v497, 2
        %v511 = vsel %vm356, %v509, %v510
        %v512 = vrot.slane %v498, 2
        %v513 = vsel %vm356, %v507, %v512
        %v514 = vrot.slane %v499, 2
        %v515 = vsel %vm356, %v510, %v514
        %516 = vrot.lane.b32.xlu0 %v508, 120
        %v517 = vpop.permute.xlu0 %516
        %518 = vrot.lane.b32.xlu0 %v511, 120
        %v519 = vpop.permute.xlu0 %518
        %520 = vrot.lane.b32.xlu0 %v513, 120
        %v521 = vpop.permute.xlu0 %520
        %522 = vrot.lane.b32.xlu0 %v515, 120
        %v523 = vpop.permute.xlu0 %522
        %v524 = vsel %vm433, %v517, %v519
        %v525 = vsel %vm433, %v521, %v523
        %v528 = vadd.f32 %v483, %v524
        %v529 = vadd.f32 %v484, %v525
        %v530 = vld [vmem:[#allocation6 + $0x10] sm:$0x1]
        %v531 = vlaneseq
        %v532 = vshrl.u32 %v531, 7
        %v533 = vsub.s32 0, %v532
        %v534 = vrot.slane %v530, %v533
        %536 = vrot.lane.b32.xlu0 %v534, 8
        %v537 = vpop.permute.xlu0 %536
        %v539 = vmul.f32 %v309, %v537
        %v540 = vmul.f32 %v310, %v537
        %v541 = vmul.f32 %v311, %v537
        %v542 = vmul.f32 %v312, %v537
        %v543 = vmul.f32 %v313, %v537
        %v544 = vmul.f32 %v314, %v537
        %v551 = vrot.slane %v539, 3
        %v552 = vrot.slane %v541, 3
        %v553 = vsel %vm377, %v551, %v552
        %v554 = vrot.slane %v540, 3
        %v555 = vrot.slane %v542, 3
        %v556 = vsel %vm377, %v554, %v555
        %v557 = vrot.slane %v543, 3
        %v558 = vsel %vm377, %v552, %v557
        %v559 = vrot.slane %v544, 3
        %v560 = vsel %vm377, %v555, %v559
        %561 = vrot.lane.b32.xlu0 %v553, 120
        %v562 = vpop.permute.xlu0 %561
        %563 = vrot.lane.b32.xlu0 %v556, 120
        %v564 = vpop.permute.xlu0 %563
        %565 = vrot.lane.b32.xlu0 %v558, 120
        %v566 = vpop.permute.xlu0 %565
        %567 = vrot.lane.b32.xlu0 %v560, 120
        %v568 = vpop.permute.xlu0 %567
        %v569 = vsel %vm433, %v562, %v564
        %v570 = vsel %vm433, %v566, %v568
        %v573 = vadd.f32 %v528, %v569
        %v574 = vadd.f32 %v529, %v570
        %v575 = vld [vmem:[#allocation6 + $0x15] sm:$0x1]
        %v576 = vlaneseq
        %v577 = vshrl.u32 %v576, 7
        %v578 = vsub.s32 0, %v577
        %v579 = vrot.slane %v575, %v578
        %581 = vrot.lane.b32.xlu0 %v579, 8
        %v582 = vpop.permute.xlu0 %581
        %v584 = vmul.f32 %v309, %v582
        %v585 = vmul.f32 %v310, %v582
        %v586 = vmul.f32 %v311, %v582
        %v587 = vmul.f32 %v312, %v582
        %v588 = vmul.f32 %v313, %v582
        %v589 = vmul.f32 %v314, %v582
        %v596 = vrot.slane %v584, 4
        %v597 = vrot.slane %v586, 4
        %v598 = vsel %vm398, %v596, %v597
        %v599 = vrot.slane %v585, 4
        %v600 = vrot.slane %v587, 4
        %v601 = vsel %vm398, %v599, %v600
        %v602 = vrot.slane %v588, 4
        %v603 = vsel %vm398, %v597, %v602
        %v604 = vrot.slane %v589, 4
        %v605 = vsel %vm398, %v600, %v604
        %606 = vrot.lane.b32.xlu0 %v598, 120
        %v607 = vpop.permute.xlu0 %606
        %608 = vrot.lane.b32.xlu0 %v601, 120
        %v609 = vpop.permute.xlu0 %608
        %610 = vrot.lane.b32.xlu0 %v603, 120
        %v611 = vpop.permute.xlu0 %610
        %612 = vrot.lane.b32.xlu0 %v605, 120
        %v613 = vpop.permute.xlu0 %612
        %v614 = vsel %vm433, %v607, %v609
        %v615 = vsel %vm433, %v611, %v613
        %v618 = vadd.f32 %v573, %v614
        %v619 = vadd.f32 %v574, %v615
        %v620 = vld [vmem:[#allocation6 + $0x2] sm:$0x1]
        %v621 = vlaneseq
        %v622 = vshrl.u32 %v621, 7
        %v623 = vsub.s32 0, %v622
        %v624 = vrot.slane %v620, %v623
        %626 = vrot.lane.b32.xlu0 %v624, 16
        %v627 = vpop.permute.xlu0 %626
        %v629 = vmul.f32 %v309, %v627
        %v630 = vmul.f32 %v310, %v627
        %v631 = vmul.f32 %v311, %v627
        %v632 = vmul.f32 %v312, %v627
        %637 = vrot.lane.b32.xlu0 %v629, 112
        %v638 = vpop.permute.xlu0 %637
        %639 = vrot.lane.b32.xlu0 %v630, 112
        %v640 = vpop.permute.xlu0 %639
        %641 = vrot.lane.b32.xlu0 %v631, 112
        %v642 = vpop.permute.xlu0 %641
        %643 = vrot.lane.b32.xlu0 %v632, 112
        %v644 = vpop.permute.xlu0 %643
        %vm645 = vcmask 916480
        %v646 = vsel %vm645, %v638, %v640
        %v647 = vsel %vm645, %v642, %v644
        %v650 = vadd.f32 %v618, %v646
        %v651 = vadd.f32 %v619, %v647
        %v652 = vld [vmem:[#allocation6 + $0x7] sm:$0x1]
        %v653 = vlaneseq
        %v654 = vshrl.u32 %v653, 7
        %v655 = vsub.s32 0, %v654
        %v656 = vrot.slane %v652, %v655
        %658 = vrot.lane.b32.xlu0 %v656, 16
        %v659 = vpop.permute.xlu0 %658
        %v661 = vmul.f32 %v309, %v659
        %v662 = vmul.f32 %v310, %v659
        %v663 = vmul.f32 %v311, %v659
        %v664 = vmul.f32 %v312, %v659
        %v665 = vmul.f32 %v313, %v659
        %v666 = vmul.f32 %v314, %v659
        %v673 = vrot.slane %v661, 1
        %v674 = vrot.slane %v663, 1
        %v675 = vsel %vm335, %v673, %v674
        %v676 = vrot.slane %v662, 1
        %v677 = vrot.slane %v664, 1
        %v678 = vsel %vm335, %v676, %v677
        %v679 = vrot.slane %v665, 1
        %v680 = vsel %vm335, %v674, %v679
        %v681 = vrot.slane %v666, 1
        %v682 = vsel %vm335, %v677, %v681
        %683 = vrot.lane.b32.xlu0 %v675, 112
        %v684 = vpop.permute.xlu0 %683
        %685 = vrot.lane.b32.xlu0 %v678, 112
        %v686 = vpop.permute.xlu0 %685
        %687 = vrot.lane.b32.xlu0 %v680, 112
        %v688 = vpop.permute.xlu0 %687
        %689 = vrot.lane.b32.xlu0 %v682, 112
        %v690 = vpop.permute.xlu0 %689
        %v691 = vsel %vm645, %v684, %v686
        %v692 = vsel %vm645, %v688, %v690
        %v695 = vadd.f32 %v650, %v691
        %v696 = vadd.f32 %v651, %v692
        %v697 = vld [vmem:[#allocation6 + $0xc] sm:$0x1]
        %v698 = vlaneseq
        %v699 = vshrl.u32 %v698, 7
        %v700 = vsub.s32 0, %v699
        %v701 = vrot.slane %v697, %v700
        %703 = vrot.lane.b32.xlu0 %v701, 16
        %v704 = vpop.permute.xlu0 %703
        %v706 = vmul.f32 %v309, %v704
        %v707 = vmul.f32 %v310, %v704
        %v708 = vmul.f32 %v311, %v704
        %v709 = vmul.f32 %v312, %v704
        %v710 = vmul.f32 %v313, %v704
        %v711 = vmul.f32 %v314, %v704
        %v718 = vrot.slane %v706, 2
        %v719 = vrot.slane %v708, 2
        %v720 = vsel %vm356, %v718, %v719
        %v721 = vrot.slane %v707, 2
        %v722 = vrot.slane %v709, 2
        %v723 = vsel %vm356, %v721, %v722
        %v724 = vrot.slane %v710, 2
        %v725 = vsel %vm356, %v719, %v724
        %v726 = vrot.slane %v711, 2
        %v727 = vsel %vm356, %v722, %v726
        %728 = vrot.lane.b32.xlu0 %v720, 112
        %v729 = vpop.permute.xlu0 %728
        %730 = vrot.lane.b32.xlu0 %v723, 112
        %v731 = vpop.permute.xlu0 %730
        %732 = vrot.lane.b32.xlu0 %v725, 112
        %v733 = vpop.permute.xlu0 %732
        %734 = vrot.lane.b32.xlu0 %v727, 112
        %v735 = vpop.permute.xlu0 %734
        %v736 = vsel %vm645, %v729, %v731
        %v737 = vsel %vm645, %v733, %v735
        %v740 = vadd.f32 %v695, %v736
        %v741 = vadd.f32 %v696, %v737
        %v742 = vld [vmem:[#allocation6 + $0x11] sm:$0x1]
        %v743 = vlaneseq
        %v744 = vshrl.u32 %v743, 7
        %v745 = vsub.s32 0, %v744
        %v746 = vrot.slane %v742, %v745
        %748 = vrot.lane.b32.xlu0 %v746, 16
        %v749 = vpop.permute.xlu0 %748
        %v751 = vmul.f32 %v309, %v749
        %v752 = vmul.f32 %v310, %v749
        %v753 = vmul.f32 %v311, %v749
        %v754 = vmul.f32 %v312, %v749
        %v755 = vmul.f32 %v313, %v749
        %v756 = vmul.f32 %v314, %v749
        %v763 = vrot.slane %v751, 3
        %v764 = vrot.slane %v753, 3
        %v765 = vsel %vm377, %v763, %v764
        %v766 = vrot.slane %v752, 3
        %v767 = vrot.slane %v754, 3
        %v768 = vsel %vm377, %v766, %v767
        %v769 = vrot.slane %v755, 3
        %v770 = vsel %vm377, %v764, %v769
        %v771 = vrot.slane %v756, 3
        %v772 = vsel %vm377, %v767, %v771
        %773 = vrot.lane.b32.xlu0 %v765, 112
        %v774 = vpop.permute.xlu0 %773
        %775 = vrot.lane.b32.xlu0 %v768, 112
        %v776 = vpop.permute.xlu0 %775
        %777 = vrot.lane.b32.xlu0 %v770, 112
        %v778 = vpop.permute.xlu0 %777
        %779 = vrot.lane.b32.xlu0 %v772, 112
        %v780 = vpop.permute.xlu0 %779
        %v781 = vsel %vm645, %v774, %v776
        %v782 = vsel %vm645, %v778, %v780
        %v785 = vadd.f32 %v740, %v781
        %v786 = vadd.f32 %v741, %v782
        %v787 = vld [vmem:[#allocation6 + $0x16] sm:$0x1]
        %v788 = vlaneseq
        %v789 = vshrl.u32 %v788, 7
        %v790 = vsub.s32 0, %v789
        %v791 = vrot.slane %v787, %v790
        %793 = vrot.lane.b32.xlu0 %v791, 16
        %v794 = vpop.permute.xlu0 %793
        %v796 = vmul.f32 %v309, %v794
        %v797 = vmul.f32 %v310, %v794
        %v798 = vmul.f32 %v311, %v794
        %v799 = vmul.f32 %v312, %v794
        %v800 = vmul.f32 %v313, %v794
        %v801 = vmul.f32 %v314, %v794
        %v808 = vrot.slane %v796, 4
        %v809 = vrot.slane %v798, 4
        %v810 = vsel %vm398, %v808, %v809
        %v811 = vrot.slane %v797, 4
        %v812 = vrot.slane %v799, 4
        %v813 = vsel %vm398, %v811, %v812
        %v814 = vrot.slane %v800, 4
        %v815 = vsel %vm398, %v809, %v814
        %v816 = vrot.slane %v801, 4
        %v817 = vsel %vm398, %v812, %v816
        %818 = vrot.lane.b32.xlu0 %v810, 112
        %v819 = vpop.permute.xlu0 %818
        %820 = vrot.lane.b32.xlu0 %v813, 112
        %v821 = vpop.permute.xlu0 %820
        %822 = vrot.lane.b32.xlu0 %v815, 112
        %v823 = vpop.permute.xlu0 %822
        %824 = vrot.lane.b32.xlu0 %v817, 112
        %v825 = vpop.permute.xlu0 %824
        %v826 = vsel %vm645, %v819, %v821
        %v827 = vsel %vm645, %v823, %v825
        %v830 = vadd.f32 %v785, %v826
        %v831 = vadd.f32 %v786, %v827
        %v832 = vld [vmem:[#allocation6 + $0x3] sm:$0x1]
        %v833 = vlaneseq
        %v834 = vshrl.u32 %v833, 7
        %v835 = vsub.s32 0, %v834
        %v836 = vrot.slane %v832, %v835
        %838 = vrot.lane.b32.xlu0 %v836, 24
        %v839 = vpop.permute.xlu0 %838
        %v841 = vmul.f32 %v309, %v839
        %v842 = vmul.f32 %v310, %v839
        %v843 = vmul.f32 %v311, %v839
        %v844 = vmul.f32 %v312, %v839
        %849 = vrot.lane.b32.xlu0 %v841, 104
        %v850 = vpop.permute.xlu0 %849
        %851 = vrot.lane.b32.xlu0 %v842, 104
        %v852 = vpop.permute.xlu0 %851
        %853 = vrot.lane.b32.xlu0 %v843, 104
        %v854 = vpop.permute.xlu0 %853
        %855 = vrot.lane.b32.xlu0 %v844, 104
        %v856 = vpop.permute.xlu0 %855
        %vm857 = vcmask 850944
        %v858 = vsel %vm857, %v850, %v852
        %v859 = vsel %vm857, %v854, %v856
        %v862 = vadd.f32 %v830, %v858
        %v863 = vadd.f32 %v831, %v859
        %v864 = vld [vmem:[#allocation6 + $0x8] sm:$0x1]
        %v865 = vlaneseq
        %v866 = vshrl.u32 %v865, 7
        %v867 = vsub.s32 0, %v866
        %v868 = vrot.slane %v864, %v867
        %870 = vrot.lane.b32.xlu0 %v868, 24
        %v871 = vpop.permute.xlu0 %870
        %v873 = vmul.f32 %v309, %v871
        %v874 = vmul.f32 %v310, %v871
        %v875 = vmul.f32 %v311, %v871
        %v876 = vmul.f32 %v312, %v871
        %v877 = vmul.f32 %v313, %v871
        %v878 = vmul.f32 %v314, %v871
        %v885 = vrot.slane %v873, 1
        %v886 = vrot.slane %v875, 1
        %v887 = vsel %vm335, %v885, %v886
        %v888 = vrot.slane %v874, 1
        %v889 = vrot.slane %v876, 1
        %v890 = vsel %vm335, %v888, %v889
        %v891 = vrot.slane %v877, 1
        %v892 = vsel %vm335, %v886, %v891
        %v893 = vrot.slane %v878, 1
        %v894 = vsel %vm335, %v889, %v893
        %895 = vrot.lane.b32.xlu0 %v887, 104
        %v896 = vpop.permute.xlu0 %895
        %897 = vrot.lane.b32.xlu0 %v890, 104
        %v898 = vpop.permute.xlu0 %897
        %899 = vrot.lane.b32.xlu0 %v892, 104
        %v900 = vpop.permute.xlu0 %899
        %901 = vrot.lane.b32.xlu0 %v894, 104
        %v902 = vpop.permute.xlu0 %901
        %v903 = vsel %vm857, %v896, %v898
        %v904 = vsel %vm857, %v900, %v902
        %v907 = vadd.f32 %v862, %v903
        %v908 = vadd.f32 %v863, %v904
        %v909 = vld [vmem:[#allocation6 + $0xd] sm:$0x1]
        %v910 = vlaneseq
        %v911 = vshrl.u32 %v910, 7
        %v912 = vsub.s32 0, %v911
        %v913 = vrot.slane %v909, %v912
        %915 = vrot.lane.b32.xlu0 %v913, 24
        %v916 = vpop.permute.xlu0 %915
        %v918 = vmul.f32 %v309, %v916
        %v919 = vmul.f32 %v310, %v916
        %v920 = vmul.f32 %v311, %v916
        %v921 = vmul.f32 %v312, %v916
        %v922 = vmul.f32 %v313, %v916
        %v923 = vmul.f32 %v314, %v916
        %v930 = vrot.slane %v918, 2
        %v931 = vrot.slane %v920, 2
        %v932 = vsel %vm356, %v930, %v931
        %v933 = vrot.slane %v919, 2
        %v934 = vrot.slane %v921, 2
        %v935 = vsel %vm356, %v933, %v934
        %v936 = vrot.slane %v922, 2
        %v937 = vsel %vm356, %v931, %v936
        %v938 = vrot.slane %v923, 2
        %v939 = vsel %vm356, %v934, %v938
        %940 = vrot.lane.b32.xlu0 %v932, 104
        %v941 = vpop.permute.xlu0 %940
        %942 = vrot.lane.b32.xlu0 %v935, 104
        %v943 = vpop.permute.xlu0 %942
        %944 = vrot.lane.b32.xlu0 %v937, 104
        %v945 = vpop.permute.xlu0 %944
        %946 = vrot.lane.b32.xlu0 %v939, 104
        %v947 = vpop.permute.xlu0 %946
        %v948 = vsel %vm857, %v941, %v943
        %v949 = vsel %vm857, %v945, %v947
        %v952 = vadd.f32 %v907, %v948
        %v953 = vadd.f32 %v908, %v949
        %v954 = vld [vmem:[#allocation6 + $0x12] sm:$0x1]
        %v955 = vlaneseq
        %v956 = vshrl.u32 %v955, 7
        %v957 = vsub.s32 0, %v956
        %v958 = vrot.slane %v954, %v957
        %960 = vrot.lane.b32.xlu0 %v958, 24
        %v961 = vpop.permute.xlu0 %960
        %v963 = vmul.f32 %v309, %v961
        %v964 = vmul.f32 %v310, %v961
        %v965 = vmul.f32 %v311, %v961
        %v966 = vmul.f32 %v312, %v961
        %v967 = vmul.f32 %v313, %v961
        %v968 = vmul.f32 %v314, %v961
        %v975 = vrot.slane %v963, 3
        %v976 = vrot.slane %v965, 3
        %v977 = vsel %vm377, %v975, %v976
        %v978 = vrot.slane %v964, 3
        %v979 = vrot.slane %v966, 3
        %v980 = vsel %vm377, %v978, %v979
        %v981 = vrot.slane %v967, 3
        %v982 = vsel %vm377, %v976, %v981
        %v983 = vrot.slane %v968, 3
        %v984 = vsel %vm377, %v979, %v983
        %985 = vrot.lane.b32.xlu0 %v977, 104
        %v986 = vpop.permute.xlu0 %985
        %987 = vrot.lane.b32.xlu0 %v980, 104
        %v988 = vpop.permute.xlu0 %987
        %989 = vrot.lane.b32.xlu0 %v982, 104
        %v990 = vpop.permute.xlu0 %989
        %991 = vrot.lane.b32.xlu0 %v984, 104
        %v992 = vpop.permute.xlu0 %991
        %v993 = vsel %vm857, %v986, %v988
        %v994 = vsel %vm857, %v990, %v992
        %v997 = vadd.f32 %v952, %v993
        %v998 = vadd.f32 %v953, %v994
        %v999 = vld [vmem:[#allocation6 + $0x17] sm:$0x1]
        %v1000 = vlaneseq
        %v1001 = vshrl.u32 %v1000, 7
        %v1002 = vsub.s32 0, %v1001
        %v1003 = vrot.slane %v999, %v1002
        %1005 = vrot.lane.b32.xlu0 %v1003, 24
        %v1006 = vpop.permute.xlu0 %1005
        %v1008 = vmul.f32 %v309, %v1006
        %v1009 = vmul.f32 %v310, %v1006
        %v1010 = vmul.f32 %v311, %v1006
        %v1011 = vmul.f32 %v312, %v1006
        %v1012 = vmul.f32 %v313, %v1006
        %v1013 = vmul.f32 %v314, %v1006
        %v1020 = vrot.slane %v1008, 4
        %v1021 = vrot.slane %v1010, 4
        %v1022 = vsel %vm398, %v1020, %v1021
        %v1023 = vrot.slane %v1009, 4
        %v1024 = vrot.slane %v1011, 4
        %v1025 = vsel %vm398, %v1023, %v1024
        %v1026 = vrot.slane %v1012, 4
        %v1027 = vsel %vm398, %v1021, %v1026
        %v1028 = vrot.slane %v1013, 4
        %v1029 = vsel %vm398, %v1024, %v1028
        %1030 = vrot.lane.b32.xlu0 %v1022, 104
        %v1031 = vpop.permute.xlu0 %1030
        %1032 = vrot.lane.b32.xlu0 %v1025, 104
        %v1033 = vpop.permute.xlu0 %1032
        %1034 = vrot.lane.b32.xlu0 %v1027, 104
        %v1035 = vpop.permute.xlu0 %1034
        %1036 = vrot.lane.b32.xlu0 %v1029, 104
        %v1037 = vpop.permute.xlu0 %1036
        %v1038 = vsel %vm857, %v1031, %v1033
        %v1039 = vsel %vm857, %v1035, %v1037
        %v1042 = vadd.f32 %v997, %v1038
        %v1043 = vadd.f32 %v998, %v1039
        %v1044 = vld [vmem:[#allocation6 + $0x4] sm:$0x1]
        %v1045 = vlaneseq
        %v1046 = vshrl.u32 %v1045, 7
        %v1047 = vsub.s32 0, %v1046
        %v1048 = vrot.slane %v1044, %v1047
        %1050 = vrot.lane.b32.xlu0 %v1048, 32
        %v1051 = vpop.permute.xlu0 %1050
        %v1053 = vmul.f32 %v309, %v1051
        %v1054 = vmul.f32 %v310, %v1051
        %v1055 = vmul.f32 %v311, %v1051
        %v1056 = vmul.f32 %v312, %v1051
        %1061 = vrot.lane.b32.xlu0 %v1053, 96
        %v1062 = vpop.permute.xlu0 %1061
        %1063 = vrot.lane.b32.xlu0 %v1054, 96
        %v1064 = vpop.permute.xlu0 %1063
        %1065 = vrot.lane.b32.xlu0 %v1055, 96
        %v1066 = vpop.permute.xlu0 %1065
        %1067 = vrot.lane.b32.xlu0 %v1056, 96
        %v1068 = vpop.permute.xlu0 %1067
        %vm1069 = vcmask 785408
        %v1070 = vsel %vm1069, %v1062, %v1064
        %v1071 = vsel %vm1069, %v1066, %v1068
        %v1074 = vadd.f32 %v1042, %v1070
        %v1075 = vadd.f32 %v1043, %v1071
        %v1076 = vld [vmem:[#allocation6 + $0x9] sm:$0x1]
        %v1077 = vlaneseq
        %v1078 = vshrl.u32 %v1077, 7
        %v1079 = vsub.s32 0, %v1078
        %v1080 = vrot.slane %v1076, %v1079
        %1082 = vrot.lane.b32.xlu0 %v1080, 32
        %v1083 = vpop.permute.xlu0 %1082
        %v1085 = vmul.f32 %v309, %v1083
        %v1086 = vmul.f32 %v310, %v1083
        %v1087 = vmul.f32 %v311, %v1083
        %v1088 = vmul.f32 %v312, %v1083
        %v1089 = vmul.f32 %v313, %v1083
        %v1090 = vmul.f32 %v314, %v1083
        %v1097 = vrot.slane %v1085, 1
        %v1098 = vrot.slane %v1087, 1
        %v1099 = vsel %vm335, %v1097, %v1098
        %v1100 = vrot.slane %v1086, 1
        %v1101 = vrot.slane %v1088, 1
        %v1102 = vsel %vm335, %v1100, %v1101
        %v1103 = vrot.slane %v1089, 1
        %v1104 = vsel %vm335, %v1098, %v1103
        %v1105 = vrot.slane %v1090, 1
        %v1106 = vsel %vm335, %v1101, %v1105
        %1107 = vrot.lane.b32.xlu0 %v1099, 96
        %v1108 = vpop.permute.xlu0 %1107
        %1109 = vrot.lane.b32.xlu0 %v1102, 96
        %v1110 = vpop.permute.xlu0 %1109
        %1111 = vrot.lane.b32.xlu0 %v1104, 96
        %v1112 = vpop.permute.xlu0 %1111
        %1113 = vrot.lane.b32.xlu0 %v1106, 96
        %v1114 = vpop.permute.xlu0 %1113
        %v1115 = vsel %vm1069, %v1108, %v1110
        %v1116 = vsel %vm1069, %v1112, %v1114
        %v1119 = vadd.f32 %v1074, %v1115
        %v1120 = vadd.f32 %v1075, %v1116
        %v1121 = vld [vmem:[#allocation6 + $0xe] sm:$0x1]
        %v1122 = vlaneseq
        %v1123 = vshrl.u32 %v1122, 7
        %v1124 = vsub.s32 0, %v1123
        %v1125 = vrot.slane %v1121, %v1124
        %1127 = vrot.lane.b32.xlu0 %v1125, 32
        %v1128 = vpop.permute.xlu0 %1127
        %v1130 = vmul.f32 %v309, %v1128
        %v1131 = vmul.f32 %v310, %v1128
        %v1132 = vmul.f32 %v311, %v1128
        %v1133 = vmul.f32 %v312, %v1128
        %v1134 = vmul.f32 %v313, %v1128
        %v1135 = vmul.f32 %v314, %v1128
        %v1142 = vrot.slane %v1130, 2
        %v1143 = vrot.slane %v1132, 2
        %v1144 = vsel %vm356, %v1142, %v1143
        %v1145 = vrot.slane %v1131, 2
        %v1146 = vrot.slane %v1133, 2
        %v1147 = vsel %vm356, %v1145, %v1146
        %v1148 = vrot.slane %v1134, 2
        %v1149 = vsel %vm356, %v1143, %v1148
        %v1150 = vrot.slane %v1135, 2
        %v1151 = vsel %vm356, %v1146, %v1150
        %1152 = vrot.lane.b32.xlu0 %v1144, 96
        %v1153 = vpop.permute.xlu0 %1152
        %1154 = vrot.lane.b32.xlu0 %v1147, 96
        %v1155 = vpop.permute.xlu0 %1154
        %1156 = vrot.lane.b32.xlu0 %v1149, 96
        %v1157 = vpop.permute.xlu0 %1156
        %1158 = vrot.lane.b32.xlu0 %v1151, 96
        %v1159 = vpop.permute.xlu0 %1158
        %v1160 = vsel %vm1069, %v1153, %v1155
        %v1161 = vsel %vm1069, %v1157, %v1159
        %v1164 = vadd.f32 %v1119, %v1160
        %v1165 = vadd.f32 %v1120, %v1161
        %v1166 = vld [vmem:[#allocation6 + $0x13] sm:$0x1]
        %v1167 = vlaneseq
        %v1168 = vshrl.u32 %v1167, 7
        %v1169 = vsub.s32 0, %v1168
        %v1170 = vrot.slane %v1166, %v1169
        %1172 = vrot.lane.b32.xlu0 %v1170, 32
        %v1173 = vpop.permute.xlu0 %1172
        %v1175 = vmul.f32 %v309, %v1173
        %v1176 = vmul.f32 %v310, %v1173
        %v1177 = vmul.f32 %v311, %v1173
        %v1178 = vmul.f32 %v312, %v1173
        %v1179 = vmul.f32 %v313, %v1173
        %v1180 = vmul.f32 %v314, %v1173
        %v1187 = vrot.slane %v1175, 3
        %v1188 = vrot.slane %v1177, 3
        %v1189 = vsel %vm377, %v1187, %v1188
        %v1190 = vrot.slane %v1176, 3
        %v1191 = vrot.slane %v1178, 3
        %v1192 = vsel %vm377, %v1190, %v1191
        %v1193 = vrot.slane %v1179, 3
        %v1194 = vsel %vm377, %v1188, %v1193
        %v1195 = vrot.slane %v1180, 3
        %v1196 = vsel %vm377, %v1191, %v1195
        %1197 = vrot.lane.b32.xlu0 %v1189, 96
        %v1198 = vpop.permute.xlu0 %1197
        %1199 = vrot.lane.b32.xlu0 %v1192, 96
        %v1200 = vpop.permute.xlu0 %1199
        %1201 = vrot.lane.b32.xlu0 %v1194, 96
        %v1202 = vpop.permute.xlu0 %1201
        %1203 = vrot.lane.b32.xlu0 %v1196, 96
        %v1204 = vpop.permute.xlu0 %1203
        %v1205 = vsel %vm1069, %v1198, %v1200
        %v1206 = vsel %vm1069, %v1202, %v1204
        %v1209 = vadd.f32 %v1164, %v1205
        %v1210 = vadd.f32 %v1165, %v1206
        %v1211 = vld [vmem:[#allocation6 + $0x18] sm:$0x1]
        %v1212 = vlaneseq
        %v1213 = vshrl.u32 %v1212, 7
        %v1214 = vsub.s32 0, %v1213
        %v1215 = vrot.slane %v1211, %v1214
        %1217 = vrot.lane.b32.xlu0 %v1215, 32
        %v1218 = vpop.permute.xlu0 %1217
        %v1220 = vmul.f32 %v309, %v1218
        %v1221 = vmul.f32 %v310, %v1218
        %v1222 = vmul.f32 %v311, %v1218
        %v1223 = vmul.f32 %v312, %v1218
        %v1224 = vmul.f32 %v313, %v1218
        %v1225 = vmul.f32 %v314, %v1218
        %v1232 = vrot.slane %v1220, 4
        %v1233 = vrot.slane %v1222, 4
        %v1234 = vsel %vm398, %v1232, %v1233
        %v1235 = vrot.slane %v1221, 4
        %v1236 = vrot.slane %v1223, 4
        %v1237 = vsel %vm398, %v1235, %v1236
        %v1238 = vrot.slane %v1224, 4
        %v1239 = vsel %vm398, %v1233, %v1238
        %v1240 = vrot.slane %v1225, 4
        %v1241 = vsel %vm398, %v1236, %v1240
        %1242 = vrot.lane.b32.xlu0 %v1234, 96
        %v1243 = vpop.permute.xlu0 %1242
        %1244 = vrot.lane.b32.xlu0 %v1237, 96
        %v1245 = vpop.permute.xlu0 %1244
        %1246 = vrot.lane.b32.xlu0 %v1239, 96
        %v1247 = vpop.permute.xlu0 %1246
        %1248 = vrot.lane.b32.xlu0 %v1241, 96
        %v1249 = vpop.permute.xlu0 %1248
        %v1250 = vsel %vm1069, %v1243, %v1245
        %v1251 = vsel %vm1069, %v1247, %v1249
        %v1254 = vadd.f32 %v1209, %v1250
        %v1255 = vadd.f32 %v1210, %v1251
        %v1256 = vld [vmem:[%s3] sm:$0x1]
        %v1258 = vlaneseq
        %v1259 = vshrl.u32 %v1258, 7
        %v1260 = vsub.s32 0, %v1259
        %v1261 = vrot.slane %v1256, %v1260
        %v1263 = vadd.f32 %v1254, %v1261
        %v1264 = vadd.f32 %v1255, %v1261
        %v1265 = vxor.u32 %v1263, 2147483648
        %v1266 = vxor.u32 %v1264, 2147483648
        %v1267 = vmul.f32 %v1265, 1.442695
        %v1268 = vpow.pop %v1267
        %v1269 = vmul.f32 %v1266, 1.442695
        %v1270 = vpow.pop %v1269
        %v1271 = vadd.f32 %v1268, 1.0
        %v1272 = vadd.f32 %v1270, 1.0
        %v1273 = vrcp.pop %v1271
        %v1274 = vmul.f32 1.0, %v1273
        %v1275 = vrcp.pop %v1272
        %v1276 = vmul.f32 1.0, %v1275
        %v1277 = vmul.f32 %v1263, %v1274
        %v1278 = vmul.f32 %v1264, %v1276
        %v1279 = vld [vmem:[#allocation8] sm:$0xff]
        %v1280 = vld [vmem:[#allocation8 + $0x8] sm:$0xff]
        %v1281 = vld [vmem:[#allocation8 + $0x10] sm:$0xff]
        %v1282 = vld [vmem:[#allocation8 + $0x18] sm:$0xff]
        %v1283 = vld [vmem:[#allocation8 + $0x20] sm:$0xff]
        %v1284 = vld [vmem:[#allocation8 + $0x28] sm:$0xff]
        %v1285 = vld [vmem:[#allocation8 + $0x30] sm:$0xff]
        %v1286 = vld [vmem:[#allocation8 + $0x38] sm:$0xff]
        %v1287 = vld [vmem:[#allocation8 + $0x40] sm:$0xff]
        %v1288 = vld [vmem:[#allocation8 + $0x48] sm:$0xff]
        %v1289 = vld [vmem:[#allocation8 + $0x50] sm:$0xff]
        %v1290 = vld [vmem:[#allocation8 + $0x58] sm:$0xff]
        %v1291 = vld [vmem:[#allocation8 + $0x60] sm:$0xff]
        %v1292 = vld [vmem:[#allocation8 + $0x68] sm:$0xff]
        %v1293 = vld [vmem:[#allocation8 + $0x70] sm:$0xff]
        %v1294 = vld [vmem:[#allocation8 + $0x78] sm:$0xff]
        %v1295 = vld [vmem:[%s4] sm:$0x1]
        %v1297 = vlaneseq
        %v1298 = vshrl.u32 %v1297, 7
        %v1299 = vsub.s32 0, %v1298
        %v1300 = vrot.slane %v1295, %v1299
        %1302 = vmatprep.subr.mxu0 0.0
        %1303 = vmatpush1.msra.mxu0 %v1279
        %1304 = vmatprep.subr.mxu0 0.0
        %1305 = vmatpush1.msra.mxu0 %v1280
        %1306 = vmatprep.subr.mxu0 0.0
        %1307 = vmatpush1.msra.mxu0 %v1281
        %1308 = vmatprep.subr.mxu0 0.0
        %1309 = vmatpush1.msra.mxu0 %v1282
        %1310 = vmatprep.subr.mxu0 0.0
        %1311 = vmatpush1.msra.mxu0 %v1283
        %1312 = vmatprep.subr.mxu0 0.0
        %1313 = vmatpush1.msra.mxu0 %v1284
        %1314 = vmatprep.subr.mxu0 0.0
        %1315 = vmatpush1.msra.mxu0 %v1285
        %1316 = vmatprep.subr.mxu0 0.0
        %1317 = vmatpush1.msra.mxu0 %v1286
        %1318 = vmatprep.subr.mxu0 0.0
        %1319 = vmatpush1.msra.mxu0 %v1287
        %1320 = vmatprep.subr.mxu0 0.0
        %1321 = vmatpush1.msra.mxu0 %v1288
        %1322 = vmatprep.subr.mxu0 0.0
        %1323 = vmatpush1.msra.mxu0 %v1289
        %1324 = vmatprep.subr.mxu0 0.0
        %1325 = vmatpush1.msra.mxu0 %v1290
        %1326 = vmatprep.subr.mxu0 0.0
        %1327 = vmatpush1.msra.mxu0 %v1291
        %1328 = vmatprep.subr.mxu0 0.0
        %1329 = vmatpush1.msra.mxu0 %v1292
        %1330 = vmatprep.subr.mxu0 0.0
        %1331 = vmatpush1.msra.mxu0 %v1293
        %1332 = vmatprep.subr.mxu0 0.0
        %1333 = vmatpush1.msra.mxu0 %v1294
        %1334 = vmatprep.subr.mxu0 0.0
        %1335 = vmatpush1.msra.mxu0 0.0
        %1336 = vmatprep.subr.mxu0 0.0
        %1337 = vmatpush1.msra.mxu0 0.0
        %1338 = vmatprep.subr.mxu0 0.0
        %1339 = vmatpush1.msra.mxu0 0.0
        %1340 = vmatprep.subr.mxu0 0.0
        %1341 = vmatpush1.msra.mxu0 0.0
        %1342 = vmatprep.subr.mxu0 0.0
        %1343 = vmatpush1.msra.mxu0 0.0
        %1344 = vmatprep.subr.mxu0 0.0
        %1345 = vmatpush1.msra.mxu0 0.0
        %1346 = vmatprep.subr.mxu0 0.0
        %1347 = vmatpush1.msra.mxu0 0.0
        %1348 = vmatprep.subr.mxu0 0.0
        %1349 = vmatpush1.msra.mxu0 0.0
        %1350 = vmatprep.subr.mxu0 0.0
        %1351 = vmatpush1.msra.mxu0 0.0
        %1352 = vmatprep.subr.mxu0 0.0
        %1353 = vmatpush1.msra.mxu0 0.0
        %1354 = vmatprep.subr.mxu0 0.0
        %1355 = vmatpush1.msra.mxu0 0.0
        %1356 = vmatprep.subr.mxu0 0.0
        %1357 = vmatpush1.msra.mxu0 0.0
        %1358 = vmatprep.subr.mxu0 0.0
        %1359 = vmatpush1.msra.mxu0 0.0
        %1360 = vmatprep.subr.mxu0 0.0
        %1361 = vmatpush1.msra.mxu0 0.0
        %1362 = vmatprep.subr.mxu0 0.0
        %1363 = vmatpush1.msra.mxu0 0.0
        %1364 = vmatprep.subr.mxu0 0.0
        %1365 = vmatpush1.msra.mxu0 0.0
        %1366 = vmatprep.mubr.f32.mxu0 0.0
        %1367 = vmatmul.mubr.f32.gmra.mrb[0].mxu0 %v1277
        %v1368 = vpop.f32.mrb[0].mxu0
        %v1369 = vadd.f32 %v1300, %v1368
        %v1370 = vpop.f32.mrb[0].mxu0
        %1371 = vmatprep.mubr.f32.mxu0 0.0
        %1372 = vmatmul.mubr.f32.gmra.mrb[0].mxu0 %v1278
        %v1373 = vpop.f32.mrb[0].mxu0
        %v1374 = vadd.f32 %v1300, %v1373
        %v1375 = vpop.f32.mrb[0].mxu0
        %1376 = vdwg.mxu0
        %v1377 = vxor.u32 %v1369, 2147483648
        %v1378 = vxor.u32 %v1374, 2147483648
        %v1379 = vmul.f32 %v1377, 1.442695
        %v1380 = vpow.pop %v1379
        %v1381 = vmul.f32 %v1378, 1.442695
        %v1382 = vpow.pop %v1381
        %v1383 = vadd.f32 %v1380, 1.0
        %v1384 = vadd.f32 %v1382, 1.0
        %v1385 = vrcp.pop %v1383
        %v1386 = vmul.f32 1.0, %v1385
        %v1387 = vrcp.pop %v1384
        %v1388 = vmul.f32 1.0, %v1387
        %v1389 = vmul.f32 %v1369, %v1386
        %v1390 = vmul.f32 %v1374, %v1388
        %v1391 = vadd.f32 %v272, %v1389
        %v1392 = vadd.f32 %v273, %v1390
        %1393 = vst [vmem:[%s271] sm:$0xff] %v1391
        %1394 = vst [vmem:[%s271 + $0x8] sm:$0xff] %v1392
        %s1395 = sand.u32 %s141, 1
        %s1396 = scalar_lea.sflag [#allocation5], %s1395
        %s1397 = sand.u32 %s141, 1
        %s1398 = smul.addr %s1397, 16
        %s1399 = scalar_lea.vmem [#allocation9], %s1398
        // Predicated region
        $region53: #{tpu_custom_call.1} parent=39 // pred_check
          %p1400 = pneg %p151
        $region54: #{tpu_custom_call.1} parent=39 // pred_check_branch
          %1402 = sbr.rel (%p1400) target = $region56
        $region55: #{tpu_custom_call.1} parent=39 // pred_region
          %s1404 = ssub.s32 256, 256
          %1405 = vsyncadd %s1396, %s1404
          %s1406 = smul.addr %s23, 2
          %s1407 = smul.addr %s1406, 128
          %s1408 = scalar_lea.hbm %s5, %s1407
          %s1409 = sshll.u32 %s1399, 4
          %s1410 = int_to_ptr.vmem [resolvable:$true] %s1409
          %1415 = dma.vmem_to_hbm [thread:$0]  %s1410, 256, %s1408, %s1396, 128, 128, 8
        $region56: #{tpu_custom_call.1} parent=39 // pred_fallthru
          _
      $region40: #{tpu_custom_call.1} parent=5 // pred_fallthru
        _
      %p1416 = scmp.le.s32.totalorder 2, %s18
      // Predicated region
      $region57: #{tpu_custom_call.1} parent=5 // pred_check
        %p1417 = pneg %p1416
      $region58: #{tpu_custom_call.1} parent=5 // pred_check_branch
        %1419 = sbr.rel (%p1417) target = $region60
      $region59: #{tpu_custom_call.1} parent=5 // pred_region
        %s1420 = ssub.s32 %s18, 2
        // Predicated region
        $region61: #{tpu_custom_call.1} parent=59 // pred_check
          %p1421 = pneg %p157
        $region62: #{tpu_custom_call.1} parent=59 // pred_check_branch
          %1423 = sbr.rel (%p1421) target = $region64
        $region63: #{tpu_custom_call.1} parent=59 // pred_region
          %s1424 = sand.u32 %s142, 1
          %s1425 = scalar_lea.sflag [#allocation5], %s1424
          %s1426 = sand.u32 %s142, 1
          %s1427 = smul.addr %s1426, 16
          %s1428 = scalar_lea.vmem [#allocation9], %s1427
          %1429 = dma.done %s1425, 256
        $region64: #{tpu_custom_call.1} parent=59 // pred_fallthru
          _
      $region60: #{tpu_custom_call.1} parent=5 // pred_fallthru
        _
    $region6: #{tpu_custom_call.1} parent=1 // loop_footer
      %s22 = sadd.s32 1, %s18
    $region7: #{tpu_custom_call.1} parent=1 // loop_footer_branch
      %17 = sbr.rel target = $region3
    $region8: #{tpu_custom_call.1} parent=1 // loop_exit
      _
    %1430 = vsyncpa [#allocation4], 1
    %s1431 = scalar_lea.sflag [#allocation4], 1
    %1432 = vsyncpa %s1431, 1
    %1433 = vsyncpa [#allocation7], 1
    %1434 = vsyncpa [#allocation5], 1
    %s1435 = scalar_lea.sflag [#allocation5], 1
    %1436 = vsyncpa %s1435, 1

</llo_original>
